<compile_context>
chip_gen: v6e
topology: v6e:2x2x1
jax: 0.10.0
libtpu: 0.0.40
codegen_flags: <defaults>
</compile_context>

<pallas_src>
import functools

import jax
import jax.numpy as jnp
from jax.experimental import pallas as pl
from jax.experimental.pallas import tpu as pltpu

EPS = 1e-5


def _bn_scale_shift(h_f32, g, be):
    """Fused training-mode BN stats from one pass over h (f32)."""
    inv_n = 1.0 / h_f32.shape[0]                               # static constant
    s1 = jnp.sum(h_f32, axis=0, keepdims=True)                 # [1, Cout]
    s2 = jnp.sum(h_f32 * h_f32, axis=0, keepdims=True)         # [1, Cout]
    mu = s1 * inv_n
    var = s2 * inv_n - mu * mu                                 # biased (PyTorch BN)
    scale = g * jax.lax.rsqrt(var + EPS)                       # EUP rsqrt
    shift = be - mu * scale
    return scale, shift


def _conv_bn_relu(h, w, g, be, act_dtype):
    """Pointwise conv (flat matmul, f32 acc) + fused BN + ReLU.

    Emits the result directly in `act_dtype` (the next matmul's operand dtype)
    so the bf16 cast happens in the epilogue, not as a separate pass.
    """
    h = jnp.dot(h, w, preferred_element_type=jnp.float32)      # [M, Cout] f32
    scale, shift = _bn_scale_shift(h, g, be)
    return jnp.maximum(h * scale + shift, 0.0).astype(act_dtype)


def _conv_bn_maxpool(h, w, g, be, *, B, N):
    """Layer 3: conv + BN (no ReLU) folded into the per-cloud max-pool.

    Since scale/shift are per-channel constants,
      max_n(h*scale + shift) = scale*max_n(h) + shift   if scale >= 0
                             = scale*min_n(h) + shift   if scale <  0,
    so the full [M, nf] BN-apply pass is skipped entirely.
    """
    h = jnp.dot(h, w, preferred_element_type=jnp.float32)      # [M, nf] f32
    nf = h.shape[1]
    scale, shift = _bn_scale_shift(h, g, be)                   # [1, nf]
    if N % 8 == 0:
        h3 = h.reshape(B, N, nf)                               # sublane-aligned split
        hmax = jnp.max(h3, axis=1)                             # [B, nf]
        hmin = jnp.min(h3, axis=1)                             # [B, nf]
    else:
        # Avoid a relayout-forcing reshape when N is not sublane aligned.
        hmax = jnp.concatenate(
            [jnp.max(h[b * N:(b + 1) * N], axis=0, keepdims=True) for b in range(B)], axis=0)
        hmin = jnp.concatenate(
            [jnp.min(h[b * N:(b + 1) * N], axis=0, keepdims=True) for b in range(B)], axis=0)
    return jnp.where(scale >= 0.0, hmax * scale + shift, hmin * scale + shift)


def disc_kernel(x_ref,
                w1_ref, g1_ref, be1_ref,
                w2_ref, g2_ref, be2_ref,
                w3_ref, g3_ref, be3_ref,
                wdr_ref, bd_ref,
                out_ref, *, B, N, act_dtype):
    # x_ref: [B*N, 8]  (xyz + zero-padded channels, points on sublanes)
    h = _conv_bn_relu(x_ref[...], w1_ref[...], g1_ref[...], be1_ref[...], act_dtype)
    h = _conv_bn_relu(h, w2_ref[...], g2_ref[...], be2_ref[...], act_dtype)
    gfeat = _conv_bn_maxpool(h, w3_ref[...], g3_ref[...], be3_ref[...], B=B, N=N)

    # dense = nn.Linear(num_features, 1): output is 1 lane wide, so use a
    # VPU multiply + lane reduce instead of an MXU push (wd passed as [1, nf]).
    out_ref[...] = (
        jnp.sum(gfeat * wdr_ref[...], axis=1, keepdims=True) + bd_ref[...]
    )


def _vmem_limit_bytes(M, nf, cd_bytes, act_bytes):
    """Budget from the actual live set, clamped to the running chip's VMEM."""
    weights = (8 * 64 + 64 * 128 + 128 * nf) * cd_bytes + (64 << 10)
    # x + h1 + h2 + raw h3 (f32) + one f32-sized temp (generous).
    per_point = 8 * cd_bytes + 64 * act_bytes + 128 * act_bytes + 2 * nf * 4
    footprint = M * per_point + weights + (4 << 20)
    try:
        cap = pltpu.get_tpu_info().vmem_capacity_bytes
    except Exception:  # pragma: no cover - conservative fallback (v7x = 64 MiB/TC)
        cap = 64 << 20
    return int(min(max(footprint, 16 << 20), int(0.9 * cap)))


def init_params(key, num_features):
    ks = jax.random.split(key, 8)
    f32 = jnp.float32

    def w(k, shape, scale=0.1):
        return (scale * jax.random.normal(k, shape)).astype(f32)

    p = {}
    # conv1: 3 -> 64   (b1/b2/b3 exist only so the reference can prove they cancel)
    p["w1"] = w(ks[0], (3, 64))
    p["b1"] = w(ks[0], (1, 64), 0.01)
    p["g1"] = (1.0 + 0.1 * jax.random.normal(ks[1], (1, 64))).astype(f32)
    p["be1"] = w(ks[1], (1, 64), 0.01)
    # conv2: 64 -> 128
    p["w2"] = w(ks[2], (64, 128))
    p["b2"] = w(ks[2], (1, 128), 0.01)
    p["g2"] = (1.0 + 0.1 * jax.random.normal(ks[3], (1, 128))).astype(f32)
    p["be2"] = w(ks[3], (1, 128), 0.01)
    # conv3: 128 -> num_features
    p["w3"] = w(ks[4], (128, num_features))
    p["b3"] = w(ks[4], (1, num_features), 0.01)
    p["g3"] = (1.0 + 0.1 * jax.random.normal(ks[5], (1, num_features))).astype(f32)
    p["be3"] = w(ks[5], (1, num_features), 0.01)
    # dense: num_features -> 1
    p["wd"] = w(ks[6], (num_features, 1))
    p["bd"] = w(ks[7], (1, 1), 0.01)
    return p


def discriminator_forward(x_ncw, params, mm_dtype=jnp.bfloat16):
    """x_ncw: [B, 3, N] float32 (PyTorch NCW layout).  Returns [B, 1]."""
    B, C, N = x_ncw.shape
    assert C == 3
    M = B * N
    nf = params["w3"].shape[1]

    # NCW -> flat (B*N, 3), then zero-pad channels to 8 so the layer-1 K dim is
    # sublane-aligned (exact: padded x columns and w1 rows are zero).  The small
    # transpose stays in the wrapper for robust lowering; x is only ~16 B/point
    # of HBM traffic vs ~50 KFLOP/point of in-kernel compute.
    x2d = jnp.transpose(x_ncw, (0, 2, 1)).reshape(M, 3).astype(jnp.float32)
    x2d = jnp.pad(x2d, ((0, 0), (0, 5))).astype(mm_dtype)
    w1p = jnp.pad(params["w1"].astype(jnp.float32), ((0, 5), (0, 0))).astype(mm_dtype)

    args = (
        x2d,
        w1p, params["g1"], params["be1"],
        params["w2"].astype(mm_dtype), params["g2"], params["be2"],
        params["w3"].astype(mm_dtype), params["g3"], params["be3"],
        params["wd"].T, params["bd"],          # wd pre-transposed to [1, nf]
    )

    cd_bytes = jnp.dtype(mm_dtype).itemsize
    vmem_limit = _vmem_limit_bytes(M, nf, cd_bytes, cd_bytes)

    vmem = pl.BlockSpec(memory_space=pltpu.MemorySpace.VMEM)
    kern = functools.partial(disc_kernel, B=B, N=N, act_dtype=mm_dtype)
    return pl.pallas_call(
        kern,
        out_shape=jax.ShapeDtypeStruct((B, 1), jnp.float32),
        in_specs=[vmem] * len(args),
        out_specs=vmem,
        compiler_params=pltpu.CompilerParams(vmem_limit_bytes=vmem_limit),
    )(*args)


def discriminator_reference(x_ncw, params):
    """Pure-JAX reference of the FULL PyTorch math (incl. conv biases), f32."""
    x = jnp.transpose(x_ncw, (0, 2, 1)).astype(jnp.float32)

    def cbr(h, w, b, g, be, relu):
        h = jnp.einsum("bnc,cd->bnd", h, w) + b
        mu = jnp.mean(h, axis=(0, 1), keepdims=True)
        var = jnp.mean((h - mu) ** 2, axis=(0, 1), keepdims=True)  # biased
        h = (h - mu) * jax.lax.rsqrt(var + EPS) * g + be
        return jnp.maximum(h, 0.0) if relu else h

    h = cbr(x, params["w1"], params["b1"], params["g1"], params["be1"], True)
    h = cbr(h, params["w2"], params["b2"], params["g2"], params["be2"], True)
    h = cbr(h, params["w3"], params["b3"], params["g3"], params["be3"], False)
    g = jnp.max(h, axis=1)
    return jnp.dot(g, params["wd"]) + params["bd"]


if __name__ == "__main__":
    B, N, NUM_FEATURES = 2, 128, 128  # 2 point clouds x 128 points x xyz

    key = jax.random.PRNGKey(0)
    k_x, k_p = jax.random.split(key)
    x = jax.random.normal(k_x, (B, 3, N), dtype=jnp.float32)  # PyTorch NCW input
    params = init_params(k_p, NUM_FEATURES)

    ref = jax.block_until_ready(discriminator_reference(x, params))

    # Exact-math path (f32 matmuls): tight check; also proves the pre-BN
    # conv-bias removal, the fused-BN algebra and the folded max/min-pool
    # (handles negative gamma) are exact.
    out_f32 = jax.block_until_ready(
        discriminator_forward(x, params, mm_dtype=jnp.float32))
    assert out_f32.shape == (B, 1), out_f32.shape
    assert jnp.allclose(out_f32, ref, atol=1e-4, rtol=1e-4), (out_f32, ref)

    # Default mixed-precision path (bf16 operands on all three convs, f32
    # accumulation + f32 BN stats): looser tolerance.
    out = jax.block_until_ready(discriminator_forward(x, params))
    assert out.shape == (B, 1), out.shape
    assert jnp.allclose(out, ref, atol=6e-2, rtol=6e-2), (out, ref)

    print("KERNEL_OK")
</pallas_src>

<mosaic_0001>
module attributes {stable_mosaic.version = 11 : i64} {
  func.func @disc_kernel(%arg0: memref<256x8xf32, #tpu.memory_space<vmem>>, %arg1: memref<8x64xf32, #tpu.memory_space<vmem>>, %arg2: memref<1x64xf32, #tpu.memory_space<vmem>>, %arg3: memref<1x64xf32, #tpu.memory_space<vmem>>, %arg4: memref<64x128xf32, #tpu.memory_space<vmem>>, %arg5: memref<1x128xf32, #tpu.memory_space<vmem>>, %arg6: memref<1x128xf32, #tpu.memory_space<vmem>>, %arg7: memref<128x128xf32, #tpu.memory_space<vmem>>, %arg8: memref<1x128xf32, #tpu.memory_space<vmem>>, %arg9: memref<1x128xf32, #tpu.memory_space<vmem>>, %arg10: memref<1x128xf32, #tpu.memory_space<vmem>>, %arg11: memref<1x1xf32, #tpu.memory_space<vmem>>, %arg12: memref<2x1xf32, #tpu.memory_space<vmem>>) attributes {dimension_semantics = [], scalar_prefetch = 0 : i64, scratch_operands = 0 : i64, tpu.core_type = #tpu.core_type<tc>} {
    %c0 = arith.constant 0 : index
    %c0_0 = arith.constant 0 : index
    %0 = vector.load %arg0[%c0, %c0_0] : memref<256x8xf32, #tpu.memory_space<vmem>>, vector<256x8xf32>
    %c0_1 = arith.constant 0 : index
    %c0_2 = arith.constant 0 : index
    %1 = vector.load %arg1[%c0_1, %c0_2] : memref<8x64xf32, #tpu.memory_space<vmem>>, vector<8x64xf32>
    %c0_3 = arith.constant 0 : index
    %c0_4 = arith.constant 0 : index
    %2 = vector.load %arg2[%c0_3, %c0_4] : memref<1x64xf32, #tpu.memory_space<vmem>>, vector<1x64xf32>
    %c0_5 = arith.constant 0 : index
    %c0_6 = arith.constant 0 : index
    %3 = vector.load %arg3[%c0_5, %c0_6] : memref<1x64xf32, #tpu.memory_space<vmem>>, vector<1x64xf32>
    %cst = arith.constant dense<0.000000e+00> : vector<256x64xf32>
    %4 = tpu.matmul %0, %1, %cst {dimension_numbers = #tpu.dot_dimension_numbers<[1], [0], [0], [1], [0, 0, 1, 1], [], []>} : vector<256x8xf32>, vector<8x64xf32>, vector<256x64xf32> -> vector<256x64xf32>
    %cst_7 = arith.constant dense<0.000000e+00> : vector<64xf32>
    %5 = vector.multi_reduction <add>, %4, %cst_7 [0] : vector<256x64xf32> to vector<64xf32>
    %6 = vector.shape_cast %5 : vector<64xf32> to vector<1x64xf32>
    %7 = arith.mulf %4, %4 : vector<256x64xf32>
    %cst_8 = arith.constant dense<0.000000e+00> : vector<64xf32>
    %8 = vector.multi_reduction <add>, %7, %cst_8 [0] : vector<256x64xf32> to vector<64xf32>
    %9 = vector.shape_cast %8 : vector<64xf32> to vector<1x64xf32>
    %cst_9 = arith.constant 3.906250e-03 : f32
    %10 = vector.broadcast %cst_9 : f32 to vector<1x64xf32>
    %11 = arith.mulf %6, %10 : vector<1x64xf32>
    %cst_10 = arith.constant 3.906250e-03 : f32
    %12 = vector.broadcast %cst_10 : f32 to vector<1x64xf32>
    %13 = arith.mulf %9, %12 : vector<1x64xf32>
    %14 = arith.mulf %11, %11 : vector<1x64xf32>
    %15 = arith.subf %13, %14 : vector<1x64xf32>
    %cst_11 = arith.constant 9.99999974E-6 : f32
    %16 = vector.broadcast %cst_11 : f32 to vector<1x64xf32>
    %17 = arith.addf %15, %16 : vector<1x64xf32>
    %18 = math.rsqrt %17 : vector<1x64xf32>
    %19 = arith.mulf %2, %18 : vector<1x64xf32>
    %20 = arith.mulf %11, %19 : vector<1x64xf32>
    %21 = arith.subf %3, %20 : vector<1x64xf32>
    %22 = vector.broadcast %19 : vector<1x64xf32> to vector<256x64xf32>
    %23 = arith.mulf %4, %22 : vector<256x64xf32>
    %24 = vector.broadcast %21 : vector<1x64xf32> to vector<256x64xf32>
    %25 = arith.addf %23, %24 : vector<256x64xf32>
    %cst_12 = arith.constant 0.000000e+00 : f32
    %26 = vector.broadcast %cst_12 : f32 to vector<256x64xf32>
    %27 = arith.maximumf %25, %26 : vector<256x64xf32>
    %c0_13 = arith.constant 0 : index
    %c0_14 = arith.constant 0 : index
    %28 = vector.load %arg4[%c0_13, %c0_14] : memref<64x128xf32, #tpu.memory_space<vmem>>, vector<64x128xf32>
    %c0_15 = arith.constant 0 : index
    %c0_16 = arith.constant 0 : index
    %29 = vector.load %arg5[%c0_15, %c0_16] : memref<1x128xf32, #tpu.memory_space<vmem>>, vector<1x128xf32>
    %c0_17 = arith.constant 0 : index
    %c0_18 = arith.constant 0 : index
    %30 = vector.load %arg6[%c0_17, %c0_18] : memref<1x128xf32, #tpu.memory_space<vmem>>, vector<1x128xf32>
    %cst_19 = arith.constant dense<0.000000e+00> : vector<256x128xf32>
    %31 = tpu.matmul %27, %28, %cst_19 {dimension_numbers = #tpu.dot_dimension_numbers<[1], [0], [0], [1], [0, 0, 1, 1], [], []>} : vector<256x64xf32>, vector<64x128xf32>, vector<256x128xf32> -> vector<256x128xf32>
    %cst_20 = arith.constant dense<0.000000e+00> : vector<128xf32>
    %32 = vector.multi_reduction <add>, %31, %cst_20 [0] : vector<256x128xf32> to vector<128xf32>
    %33 = vector.shape_cast %32 : vector<128xf32> to vector<1x128xf32>
    %34 = arith.mulf %31, %31 : vector<256x128xf32>
    %cst_21 = arith.constant dense<0.000000e+00> : vector<128xf32>
    %35 = vector.multi_reduction <add>, %34, %cst_21 [0] : vector<256x128xf32> to vector<128xf32>
    %36 = vector.shape_cast %35 : vector<128xf32> to vector<1x128xf32>
    %cst_22 = arith.constant 3.906250e-03 : f32
    %37 = vector.broadcast %cst_22 : f32 to vector<1x128xf32>
    %38 = arith.mulf %33, %37 : vector<1x128xf32>
    %cst_23 = arith.constant 3.906250e-03 : f32
    %39 = vector.broadcast %cst_23 : f32 to vector<1x128xf32>
    %40 = arith.mulf %36, %39 : vector<1x128xf32>
    %41 = arith.mulf %38, %38 : vector<1x128xf32>
    %42 = arith.subf %40, %41 : vector<1x128xf32>
    %cst_24 = arith.constant 9.99999974E-6 : f32
    %43 = vector.broadcast %cst_24 : f32 to vector<1x128xf32>
    %44 = arith.addf %42, %43 : vector<1x128xf32>
    %45 = math.rsqrt %44 : vector<1x128xf32>
    %46 = arith.mulf %29, %45 : vector<1x128xf32>
    %47 = arith.mulf %38, %46 : vector<1x128xf32>
    %48 = arith.subf %30, %47 : vector<1x128xf32>
    %49 = vector.broadcast %46 : vector<1x128xf32> to vector<256x128xf32>
    %50 = arith.mulf %31, %49 : vector<256x128xf32>
    %51 = vector.broadcast %48 : vector<1x128xf32> to vector<256x128xf32>
    %52 = arith.addf %50, %51 : vector<256x128xf32>
    %cst_25 = arith.constant 0.000000e+00 : f32
    %53 = vector.broadcast %cst_25 : f32 to vector<256x128xf32>
    %54 = arith.maximumf %52, %53 : vector<256x128xf32>
    %c0_26 = arith.constant 0 : index
    %c0_27 = arith.constant 0 : index
    %55 = vector.load %arg7[%c0_26, %c0_27] : memref<128x128xf32, #tpu.memory_space<vmem>>, vector<128x128xf32>
    %c0_28 = arith.constant 0 : index
    %c0_29 = arith.constant 0 : index
    %56 = vector.load %arg8[%c0_28, %c0_29] : memref<1x128xf32, #tpu.memory_space<vmem>>, vector<1x128xf32>
    %c0_30 = arith.constant 0 : index
    %c0_31 = arith.constant 0 : index
    %57 = vector.load %arg9[%c0_30, %c0_31] : memref<1x128xf32, #tpu.memory_space<vmem>>, vector<1x128xf32>
    %cst_32 = arith.constant dense<0.000000e+00> : vector<256x128xf32>
    %58 = tpu.matmul %54, %55, %cst_32 {dimension_numbers = #tpu.dot_dimension_numbers<[1], [0], [0], [1], [0, 0, 1, 1], [], []>} : vector<256x128xf32>, vector<128x128xf32>, vector<256x128xf32> -> vector<256x128xf32>
    %cst_33 = arith.constant dense<0.000000e+00> : vector<128xf32>
    %59 = vector.multi_reduction <add>, %58, %cst_33 [0] : vector<256x128xf32> to vector<128xf32>
    %60 = vector.shape_cast %59 : vector<128xf32> to vector<1x128xf32>
    %61 = arith.mulf %58, %58 : vector<256x128xf32>
    %cst_34 = arith.constant dense<0.000000e+00> : vector<128xf32>
    %62 = vector.multi_reduction <add>, %61, %cst_34 [0] : vector<256x128xf32> to vector<128xf32>
    %63 = vector.shape_cast %62 : vector<128xf32> to vector<1x128xf32>
    %cst_35 = arith.constant 3.906250e-03 : f32
    %64 = vector.broadcast %cst_35 : f32 to vector<1x128xf32>
    %65 = arith.mulf %60, %64 : vector<1x128xf32>
    %cst_36 = arith.constant 3.906250e-03 : f32
    %66 = vector.broadcast %cst_36 : f32 to vector<1x128xf32>
    %67 = arith.mulf %63, %66 : vector<1x128xf32>
    %68 = arith.mulf %65, %65 : vector<1x128xf32>
    %69 = arith.subf %67, %68 : vector<1x128xf32>
    %cst_37 = arith.constant 9.99999974E-6 : f32
    %70 = vector.broadcast %cst_37 : f32 to vector<1x128xf32>
    %71 = arith.addf %69, %70 : vector<1x128xf32>
    %72 = math.rsqrt %71 : vector<1x128xf32>
    %73 = arith.mulf %56, %72 : vector<1x128xf32>
    %74 = arith.mulf %65, %73 : vector<1x128xf32>
    %75 = arith.subf %57, %74 : vector<1x128xf32>
    %76 = vector.shape_cast %58 : vector<256x128xf32> to vector<2x128x128xf32>
    %cst_38 = arith.constant dense<0xFF800000> : vector<2x128xf32>
    %77 = vector.multi_reduction <maximumf>, %76, %cst_38 [1] : vector<2x128x128xf32> to vector<2x128xf32>
    %cst_39 = arith.constant dense<0x7F800000> : vector<2x128xf32>
    %78 = vector.multi_reduction <minimumf>, %76, %cst_39 [1] : vector<2x128x128xf32> to vector<2x128xf32>
    %cst_40 = arith.constant 0.000000e+00 : f32
    %79 = vector.broadcast %cst_40 : f32 to vector<1x128xf32>
    %80 = arith.cmpf oge, %73, %79 : vector<1x128xf32>
    %81 = vector.broadcast %73 : vector<1x128xf32> to vector<2x128xf32>
    %82 = arith.mulf %77, %81 : vector<2x128xf32>
    %83 = vector.broadcast %75 : vector<1x128xf32> to vector<2x128xf32>
    %84 = arith.addf %82, %83 : vector<2x128xf32>
    %85 = vector.broadcast %73 : vector<1x128xf32> to vector<2x128xf32>
    %86 = arith.mulf %78, %85 : vector<2x128xf32>
    %87 = vector.broadcast %75 : vector<1x128xf32> to vector<2x128xf32>
    %88 = arith.addf %86, %87 : vector<2x128xf32>
    %89 = vector.shape_cast %80 : vector<1x128xi1> to vector<1x128xi1>
    %90 = vector.broadcast %89 : vector<1x128xi1> to vector<2x128xi1>
    %91 = arith.select %90, %84, %88 : vector<2x128xi1>, vector<2x128xf32>
    %c0_41 = arith.constant 0 : index
    %c0_42 = arith.constant 0 : index
    %92 = vector.load %arg10[%c0_41, %c0_42] : memref<1x128xf32, #tpu.memory_space<vmem>>, vector<1x128xf32>
    %93 = vector.broadcast %92 : vector<1x128xf32> to vector<2x128xf32>
    %94 = arith.mulf %91, %93 : vector<2x128xf32>
    %cst_43 = arith.constant dense<0.000000e+00> : vector<2xf32>
    %95 = vector.multi_reduction <add>, %94, %cst_43 [1] : vector<2x128xf32> to vector<2xf32>
    %96 = vector.shape_cast %95 : vector<2xf32> to vector<2x1xf32>
    %c0_44 = arith.constant 0 : index
    %c0_45 = arith.constant 0 : index
    %97 = vector.load %arg11[%c0_44, %c0_45] : memref<1x1xf32, #tpu.memory_space<vmem>>, vector<1x1xf32>
    %98 = vector.broadcast %97 : vector<1x1xf32> to vector<2x1xf32>
    %99 = arith.addf %96, %98 : vector<2x1xf32>
    %c0_46 = arith.constant 0 : index
    %c0_47 = arith.constant 0 : index
    %100 = vector.load %arg12[%c0_46, %c0_47] : memref<2x1xf32, #tpu.memory_space<vmem>>, vector<2x1xf32>
    tpu.vector_store %arg12[%c0_46, %c0_47], %99 {strides = array<i32>} : memref<2x1xf32, #tpu.memory_space<vmem>>, vector<2x1xf32>,
    return
  }
}

</mosaic_0001>

<llo_original>
// kernel: tpu_custom_call.1
$region0: #{tpu_custom_call.1}
  #allocation0 [shape = 'u32[]', space=smem, size = 0x4, offset = 0x4, fixed_abs, tag = 'smem constant byte address 0x4 - core index']
  #allocation1 [shape = 'u32[144,128]{1,0:T(1,128)}', space=vmem, size = 0x12000, scoped, tag = 'internal scratch']
  #allocation2 [shape = 'f32[1,1]{1,0:T(1,128)S(1)}', space=vmem, size = 0x200, scoped, tag = 'scoped memory for tpu_custom_call.1']
  %s0 = inlined_call_operand.vmem [shape: f32[256,8], index: 0, kind: input, shape index: {}]
  %s1 = inlined_call_operand.vmem [shape: f32[8,64], index: 1, kind: input, shape index: {}]
  %s2 = inlined_call_operand.vmem [shape: f32[1,64], index: 2, kind: input, shape index: {}]
  %s3 = inlined_call_operand.vmem [shape: f32[1,64], index: 3, kind: input, shape index: {}]
  %s4 = inlined_call_operand.vmem [shape: f32[64,128], index: 4, kind: input, shape index: {}]
  %s5 = inlined_call_operand.vmem [shape: f32[1,128], index: 5, kind: input, shape index: {}]
  %s6 = inlined_call_operand.vmem [shape: f32[1,128], index: 6, kind: input, shape index: {}]
  %s7 = inlined_call_operand.vmem [shape: f32[128,128], index: 7, kind: input, shape index: {}]
  %s8 = inlined_call_operand.vmem [shape: f32[1,128], index: 8, kind: input, shape index: {}]
  %s9 = inlined_call_operand.vmem [shape: f32[1,128], index: 9, kind: input, shape index: {}]
  %s10 = inlined_call_operand.vmem [shape: f32[1,128], index: 10, kind: input, shape index: {}]
  %s11 = inlined_call_operand.<no memory space> [shape: f32[1,1], index: 11, kind: input, shape index: {}]
  %s12 = inlined_call_operand.vmem [shape: f32[2,1], index: 12, kind: output, shape index: {}]
  %s13 = sld [smem:[#allocation0]]
  $region58: #{tpu_custom_call.1} parent=0
    _
  %s15 = ssub.s32 1, %s13
  %s16 = scalar_select 0, %s15, %s13
  %v17 = vstv %s11
  %18 = vst [vmem:[#allocation2] sm:$0x1] %v17
  // Predicated region
  $region2: #{tpu_custom_call.1} parent=0 // pred_check
    _
  $region3: #{tpu_custom_call.1} parent=0 // pred_check_branch
    %20 = sbr.rel (0) target = $region5
  $region4: #{tpu_custom_call.1} parent=0 // pred_region
    _
  $region5: #{tpu_custom_call.1} parent=0 // pred_fallthru
    _
  // Predicated region
  $region6: #{tpu_custom_call.1} parent=0 // pred_check
    _
  $region7: #{tpu_custom_call.1} parent=0 // pred_check_branch
    %22 = sbr.rel (0) target = $region9
  $region8: #{tpu_custom_call.1} parent=0 // pred_region
    _
  $region9: #{tpu_custom_call.1} parent=0 // pred_fallthru
    _
  // Predicated region
  $region10: #{tpu_custom_call.1} parent=0 // pred_check
    _
  $region11: #{tpu_custom_call.1} parent=0 // pred_check_branch
    %24 = sbr.rel (0) target = $region13
  $region12: #{tpu_custom_call.1} parent=0 // pred_region
    _
  $region13: #{tpu_custom_call.1} parent=0 // pred_fallthru
    _
  // Predicated region
  $region14: #{tpu_custom_call.1} parent=0 // pred_check
    _
  $region15: #{tpu_custom_call.1} parent=0 // pred_check_branch
    %26 = sbr.rel (0) target = $region17
  $region16: #{tpu_custom_call.1} parent=0 // pred_region
    _
  $region17: #{tpu_custom_call.1} parent=0 // pred_fallthru
    _
  // Predicated region
  $region18: #{tpu_custom_call.1} parent=0 // pred_check
    _
  $region19: #{tpu_custom_call.1} parent=0 // pred_check_branch
    %28 = sbr.rel (0) target = $region21
  $region20: #{tpu_custom_call.1} parent=0 // pred_region
    _
  $region21: #{tpu_custom_call.1} parent=0 // pred_fallthru
    _
  // Predicated region
  $region22: #{tpu_custom_call.1} parent=0 // pred_check
    _
  $region23: #{tpu_custom_call.1} parent=0 // pred_check_branch
    %30 = sbr.rel (0) target = $region25
  $region24: #{tpu_custom_call.1} parent=0 // pred_region
    _
  $region25: #{tpu_custom_call.1} parent=0 // pred_fallthru
    _
  // Predicated region
  $region26: #{tpu_custom_call.1} parent=0 // pred_check
    _
  $region27: #{tpu_custom_call.1} parent=0 // pred_check_branch
    %32 = sbr.rel (0) target = $region29
  $region28: #{tpu_custom_call.1} parent=0 // pred_region
    _
  $region29: #{tpu_custom_call.1} parent=0 // pred_fallthru
    _
  // Predicated region
  $region30: #{tpu_custom_call.1} parent=0 // pred_check
    _
  $region31: #{tpu_custom_call.1} parent=0 // pred_check_branch
    %34 = sbr.rel (0) target = $region33
  $region32: #{tpu_custom_call.1} parent=0 // pred_region
    _
  $region33: #{tpu_custom_call.1} parent=0 // pred_fallthru
    _
  // Predicated region
  $region34: #{tpu_custom_call.1} parent=0 // pred_check
    _
  $region35: #{tpu_custom_call.1} parent=0 // pred_check_branch
    %36 = sbr.rel (0) target = $region37
  $region36: #{tpu_custom_call.1} parent=0 // pred_region
    _
  $region37: #{tpu_custom_call.1} parent=0 // pred_fallthru
    _
  // Predicated region
  $region38: #{tpu_custom_call.1} parent=0 // pred_check
    _
  $region39: #{tpu_custom_call.1} parent=0 // pred_check_branch
    %38 = sbr.rel (0) target = $region41
  $region40: #{tpu_custom_call.1} parent=0 // pred_region
    _
  $region41: #{tpu_custom_call.1} parent=0 // pred_fallthru
    _
  // Predicated region
  $region42: #{tpu_custom_call.1} parent=0 // pred_check
    _
  $region43: #{tpu_custom_call.1} parent=0 // pred_check_branch
    %40 = sbr.rel (0) target = $region45
  $region44: #{tpu_custom_call.1} parent=0 // pred_region
    _
  $region45: #{tpu_custom_call.1} parent=0 // pred_fallthru
    _
  // Predicated region
  $region46: #{tpu_custom_call.1} parent=0 // pred_check
    _
  $region47: #{tpu_custom_call.1} parent=0 // pred_check_branch
    %42 = sbr.rel (0) target = $region49
  $region48: #{tpu_custom_call.1} parent=0 // pred_region
    _
  $region49: #{tpu_custom_call.1} parent=0 // pred_fallthru
    _
  %v43 = vld [vmem:[%s0] sm:$0xff]
  %v44 = vld [vmem:[%s0 + $0x8] sm:$0xff]
  %v45 = vld [vmem:[%s0 + $0x10] sm:$0xff]
  %v46 = vld [vmem:[%s0 + $0x18] sm:$0xff]
  %v47 = vld [vmem:[%s0 + $0x20] sm:$0xff]
  %v48 = vld [vmem:[%s0 + $0x28] sm:$0xff]
  %v49 = vld [vmem:[%s0 + $0x30] sm:$0xff]
  %v50 = vld [vmem:[%s0 + $0x38] sm:$0xff]
  %v51 = vld [vmem:[%s0 + $0x40] sm:$0xff]
  %v52 = vld [vmem:[%s0 + $0x48] sm:$0xff]
  %v53 = vld [vmem:[%s0 + $0x50] sm:$0xff]
  %v54 = vld [vmem:[%s0 + $0x58] sm:$0xff]
  %v55 = vld [vmem:[%s0 + $0x60] sm:$0xff]
  %v56 = vld [vmem:[%s0 + $0x68] sm:$0xff]
  %v57 = vld [vmem:[%s0 + $0x70] sm:$0xff]
  %v58 = vld [vmem:[%s0 + $0x78] sm:$0xff]
  %v59 = vld [vmem:[%s0 + $0x80] sm:$0xff]
  %v60 = vld [vmem:[%s0 + $0x88] sm:$0xff]
  %v61 = vld [vmem:[%s0 + $0x90] sm:$0xff]
  %v62 = vld [vmem:[%s0 + $0x98] sm:$0xff]
  %v63 = vld [vmem:[%s0 + $0xa0] sm:$0xff]
  %v64 = vld [vmem:[%s0 + $0xa8] sm:$0xff]
  %v65 = vld [vmem:[%s0 + $0xb0] sm:$0xff]
  %v66 = vld [vmem:[%s0 + $0xb8] sm:$0xff]
  %v67 = vld [vmem:[%s0 + $0xc0] sm:$0xff]
  %v68 = vld [vmem:[%s0 + $0xc8] sm:$0xff]
  %v69 = vld [vmem:[%s0 + $0xd0] sm:$0xff]
  %v70 = vld [vmem:[%s0 + $0xd8] sm:$0xff]
  %v71 = vld [vmem:[%s0 + $0xe0] sm:$0xff]
  %v72 = vld [vmem:[%s0 + $0xe8] sm:$0xff]
  %v73 = vld [vmem:[%s0 + $0xf0] sm:$0xff]
  %v74 = vld [vmem:[%s0 + $0xf8] sm:$0xff]
  %v75 = vld [vmem:[%s1] sm:$0xff]
  %v76 = vld [vmem:[%s2] sm:$0x1]
  %v77 = vld [vmem:[%s3] sm:$0x1]
  %vm78 = vcmask 64512
  %v80 = vsel %vm78, %v43, 0
  %v83 = vsel %vm78, %v44, 0
  %v86 = vsel %vm78, %v45, 0
  %v89 = vsel %vm78, %v46, 0
  %v92 = vsel %vm78, %v47, 0
  %v95 = vsel %vm78, %v48, 0
  %v98 = vsel %vm78, %v49, 0
  %v101 = vsel %vm78, %v50, 0
  %v104 = vsel %vm78, %v51, 0
  %v107 = vsel %vm78, %v52, 0
  %v110 = vsel %vm78, %v53, 0
  %v113 = vsel %vm78, %v54, 0
  %v116 = vsel %vm78, %v55, 0
  %v119 = vsel %vm78, %v56, 0
  %v122 = vsel %vm78, %v57, 0
  %v125 = vsel %vm78, %v58, 0
  %v128 = vsel %vm78, %v59, 0
  %v131 = vsel %vm78, %v60, 0
  %v134 = vsel %vm78, %v61, 0
  %v137 = vsel %vm78, %v62, 0
  %v140 = vsel %vm78, %v63, 0
  %v143 = vsel %vm78, %v64, 0
  %v146 = vsel %vm78, %v65, 0
  %v149 = vsel %vm78, %v66, 0
  %v152 = vsel %vm78, %v67, 0
  %v155 = vsel %vm78, %v68, 0
  %v158 = vsel %vm78, %v69, 0
  %v161 = vsel %vm78, %v70, 0
  %v164 = vsel %vm78, %v71, 0
  %v167 = vsel %vm78, %v72, 0
  %v170 = vsel %vm78, %v73, 0
  %v173 = vsel %vm78, %v74, 0
  %175 = vmatprep.subr.mxu0 0.0
  %176 = vmatpush1.msra.mxu0 0.0
  %177 = vmatprep.subr.mxu0 0.0
  %178 = vmatpush1.msra.mxu0 0.0
  %179 = vmatprep.subr.mxu0 0.0
  %180 = vmatpush1.msra.mxu0 0.0
  %181 = vmatprep.subr.mxu0 0.0
  %182 = vmatpush1.msra.mxu0 0.0
  %183 = vmatprep.subr.mxu0 0.0
  %184 = vmatpush1.msra.mxu0 0.0
  %185 = vmatprep.subr.mxu0 0.0
  %186 = vmatpush1.msra.mxu0 0.0
  %187 = vmatprep.subr.mxu0 0.0
  %188 = vmatpush1.msra.mxu0 0.0
  %189 = vmatprep.subr.mxu0 0.0
  %190 = vmatpush1.msra.mxu0 0.0
  %191 = vmatprep.subr.mxu0 0.0
  %192 = vmatpush1.msra.mxu0 0.0
  %193 = vmatprep.subr.mxu0 0.0
  %194 = vmatpush1.msra.mxu0 0.0
  %195 = vmatprep.subr.mxu0 0.0
  %196 = vmatpush1.msra.mxu0 0.0
  %197 = vmatprep.subr.mxu0 0.0
  %198 = vmatpush1.msra.mxu0 0.0
  %199 = vmatprep.subr.mxu0 0.0
  %200 = vmatpush1.msra.mxu0 0.0
  %201 = vmatprep.subr.mxu0 0.0
  %202 = vmatpush1.msra.mxu0 0.0
  %203 = vmatprep.subr.mxu0 0.0
  %204 = vmatpush1.msra.mxu0 0.0
  %205 = vmatprep.subr.mxu0 0.0
  %206 = vmatpush1.msra.mxu0 %v75
  %207 = vmatprep.subr.mxu0 0.0
  %208 = vmatpush2.msra.mxu0 0.0
  %209 = vmatprep.subr.mxu0 0.0
  %210 = vmatpush2.msra.mxu0 0.0
  %211 = vmatprep.subr.mxu0 0.0
  %212 = vmatpush2.msra.mxu0 0.0
  %213 = vmatprep.subr.mxu0 0.0
  %214 = vmatpush2.msra.mxu0 0.0
  %215 = vmatprep.subr.mxu0 0.0
  %216 = vmatpush2.msra.mxu0 0.0
  %217 = vmatprep.subr.mxu0 0.0
  %218 = vmatpush2.msra.mxu0 0.0
  %219 = vmatprep.subr.mxu0 0.0
  %220 = vmatpush2.msra.mxu0 0.0
  %221 = vmatprep.subr.mxu0 0.0
  %222 = vmatpush2.msra.mxu0 0.0
  %223 = vmatprep.subr.mxu0 0.0
  %224 = vmatpush2.msra.mxu0 0.0
  %225 = vmatprep.subr.mxu0 0.0
  %226 = vmatpush2.msra.mxu0 0.0
  %227 = vmatprep.subr.mxu0 0.0
  %228 = vmatpush2.msra.mxu0 0.0
  %229 = vmatprep.subr.mxu0 0.0
  %230 = vmatpush2.msra.mxu0 0.0
  %231 = vmatprep.subr.mxu0 0.0
  %232 = vmatpush2.msra.mxu0 0.0
  %233 = vmatprep.subr.mxu0 0.0
  %234 = vmatpush2.msra.mxu0 0.0
  %235 = vmatprep.subr.mxu0 0.0
  %236 = vmatpush2.msra.mxu0 0.0
  %237 = vmatprep.subr.mxu0 0.0
  %238 = vmatpush2.msra.mxu0 0.0
  %239 = vmatprep.mubr.f32.mxu0 0.0
  %240 = vmatmul.mubr.f32.gmra.mxu0 %v80
  %v241 = vpop.f32.mrf.mxu0
  %v242 = vadd.f32 0.0, %v241
  %v243 = vpop.f32.mrf.mxu0
  %244 = vmatprep.mubr.f32.mxu0 0.0
  %245 = vmatmul.mubr.f32.gmra.mxu0 %v83
  %v246 = vpop.f32.mrf.mxu0
  %v247 = vadd.f32 0.0, %v246
  %v248 = vpop.f32.mrf.mxu0
  %249 = vmatprep.mubr.f32.mxu0 0.0
  %250 = vmatmul.mubr.f32.gmra.mxu0 %v86
  %v251 = vpop.f32.mrf.mxu0
  %v252 = vadd.f32 0.0, %v251
  %v253 = vpop.f32.mrf.mxu0
  %254 = vmatprep.mubr.f32.mxu0 0.0
  %255 = vmatmul.mubr.f32.gmra.mxu0 %v89
  %v256 = vpop.f32.mrf.mxu0
  %v257 = vadd.f32 0.0, %v256
  %v258 = vpop.f32.mrf.mxu0
  %259 = vmatprep.mubr.f32.mxu0 0.0
  %260 = vmatmul.mubr.f32.gmra.mxu0 %v92
  %v261 = vpop.f32.mrf.mxu0
  %v262 = vadd.f32 0.0, %v261
  %v263 = vpop.f32.mrf.mxu0
  %264 = vmatprep.mubr.f32.mxu0 0.0
  %265 = vmatmul.mubr.f32.gmra.mxu0 %v95
  %v266 = vpop.f32.mrf.mxu0
  %v267 = vadd.f32 0.0, %v266
  %v268 = vpop.f32.mrf.mxu0
  %269 = vmatprep.mubr.f32.mxu0 0.0
  %270 = vmatmul.mubr.f32.gmra.mxu0 %v98
  %v271 = vpop.f32.mrf.mxu0
  %v272 = vadd.f32 0.0, %v271
  %v273 = vpop.f32.mrf.mxu0
  %274 = vmatprep.mubr.f32.mxu0 0.0
  %275 = vmatmul.mubr.f32.gmra.mxu0 %v101
  %v276 = vpop.f32.mrf.mxu0
  %v277 = vadd.f32 0.0, %v276
  %v278 = vpop.f32.mrf.mxu0
  %279 = vmatprep.mubr.f32.mxu0 0.0
  %280 = vmatmul.mubr.f32.gmra.mxu0 %v104
  %v281 = vpop.f32.mrf.mxu0
  %v282 = vadd.f32 0.0, %v281
  %v283 = vpop.f32.mrf.mxu0
  %284 = vmatprep.mubr.f32.mxu0 0.0
  %285 = vmatmul.mubr.f32.gmra.mxu0 %v107
  %v286 = vpop.f32.mrf.mxu0
  %v287 = vadd.f32 0.0, %v286
  %v288 = vpop.f32.mrf.mxu0
  %289 = vmatprep.mubr.f32.mxu0 0.0
  %290 = vmatmul.mubr.f32.gmra.mxu0 %v110
  %v291 = vpop.f32.mrf.mxu0
  %v292 = vadd.f32 0.0, %v291
  %v293 = vpop.f32.mrf.mxu0
  %294 = vmatprep.mubr.f32.mxu0 0.0
  %295 = vmatmul.mubr.f32.gmra.mxu0 %v113
  %v296 = vpop.f32.mrf.mxu0
  %v297 = vadd.f32 0.0, %v296
  %v298 = vpop.f32.mrf.mxu0
  %299 = vmatprep.mubr.f32.mxu0 0.0
  %300 = vmatmul.mubr.f32.gmra.mxu0 %v116
  %v301 = vpop.f32.mrf.mxu0
  %v302 = vadd.f32 0.0, %v301
  %v303 = vpop.f32.mrf.mxu0
  %304 = vmatprep.mubr.f32.mxu0 0.0
  %305 = vmatmul.mubr.f32.gmra.mxu0 %v119
  %v306 = vpop.f32.mrf.mxu0
  %v307 = vadd.f32 0.0, %v306
  %v308 = vpop.f32.mrf.mxu0
  %309 = vmatprep.mubr.f32.mxu0 0.0
  %310 = vmatmul.mubr.f32.gmra.mxu0 %v122
  %v311 = vpop.f32.mrf.mxu0
  %v312 = vadd.f32 0.0, %v311
  %v313 = vpop.f32.mrf.mxu0
  %314 = vmatprep.mubr.f32.mxu0 0.0
  %315 = vmatmul.mubr.f32.gmra.mxu0 %v125
  %v316 = vpop.f32.mrf.mxu0
  %v317 = vadd.f32 0.0, %v316
  %v318 = vpop.f32.mrf.mxu0
  %319 = vmatprep.mubr.f32.mxu0 0.0
  %320 = vmatmul.mubr.f32.gmra.mxu0 %v128
  %v321 = vpop.f32.mrf.mxu0
  %v322 = vadd.f32 0.0, %v321
  %v323 = vpop.f32.mrf.mxu0
  %324 = vmatprep.mubr.f32.mxu0 0.0
  %325 = vmatmul.mubr.f32.gmra.mxu0 %v131
  %v326 = vpop.f32.mrf.mxu0
  %v327 = vadd.f32 0.0, %v326
  %v328 = vpop.f32.mrf.mxu0
  %329 = vmatprep.mubr.f32.mxu0 0.0
  %330 = vmatmul.mubr.f32.gmra.mxu0 %v134
  %v331 = vpop.f32.mrf.mxu0
  %v332 = vadd.f32 0.0, %v331
  %v333 = vpop.f32.mrf.mxu0
  %334 = vmatprep.mubr.f32.mxu0 0.0
  %335 = vmatmul.mubr.f32.gmra.mxu0 %v137
  %v336 = vpop.f32.mrf.mxu0
  %v337 = vadd.f32 0.0, %v336
  %v338 = vpop.f32.mrf.mxu0
  %339 = vmatprep.mubr.f32.mxu0 0.0
  %340 = vmatmul.mubr.f32.gmra.mxu0 %v140
  %v341 = vpop.f32.mrf.mxu0
  %v342 = vadd.f32 0.0, %v341
  %v343 = vpop.f32.mrf.mxu0
  %344 = vmatprep.mubr.f32.mxu0 0.0
  %345 = vmatmul.mubr.f32.gmra.mxu0 %v143
  %v346 = vpop.f32.mrf.mxu0
  %v347 = vadd.f32 0.0, %v346
  %v348 = vpop.f32.mrf.mxu0
  %349 = vmatprep.mubr.f32.mxu0 0.0
  %350 = vmatmul.mubr.f32.gmra.mxu0 %v146
  %v351 = vpop.f32.mrf.mxu0
  %v352 = vadd.f32 0.0, %v351
  %v353 = vpop.f32.mrf.mxu0
  %354 = vmatprep.mubr.f32.mxu0 0.0
  %355 = vmatmul.mubr.f32.gmra.mxu0 %v149
  %v356 = vpop.f32.mrf.mxu0
  %v357 = vadd.f32 0.0, %v356
  %v358 = vpop.f32.mrf.mxu0
  %359 = vmatprep.mubr.f32.mxu0 0.0
  %360 = vmatmul.mubr.f32.gmra.mxu0 %v152
  %v361 = vpop.f32.mrf.mxu0
  %v362 = vadd.f32 0.0, %v361
  %v363 = vpop.f32.mrf.mxu0
  %364 = vmatprep.mubr.f32.mxu0 0.0
  %365 = vmatmul.mubr.f32.gmra.mxu0 %v155
  %v366 = vpop.f32.mrf.mxu0
  %v367 = vadd.f32 0.0, %v366
  %v368 = vpop.f32.mrf.mxu0
  %369 = vmatprep.mubr.f32.mxu0 0.0
  %370 = vmatmul.mubr.f32.gmra.mxu0 %v158
  %v371 = vpop.f32.mrf.mxu0
  %v372 = vadd.f32 0.0, %v371
  %v373 = vpop.f32.mrf.mxu0
  %374 = vmatprep.mubr.f32.mxu0 0.0
  %375 = vmatmul.mubr.f32.gmra.mxu0 %v161
  %v376 = vpop.f32.mrf.mxu0
  %v377 = vadd.f32 0.0, %v376
  %v378 = vpop.f32.mrf.mxu0
  %379 = vmatprep.mubr.f32.mxu0 0.0
  %380 = vmatmul.mubr.f32.gmra.mxu0 %v164
  %v381 = vpop.f32.mrf.mxu0
  %v382 = vadd.f32 0.0, %v381
  %v383 = vpop.f32.mrf.mxu0
  %384 = vmatprep.mubr.f32.mxu0 0.0
  %385 = vmatmul.mubr.f32.gmra.mxu0 %v167
  %v386 = vpop.f32.mrf.mxu0
  %v387 = vadd.f32 0.0, %v386
  %v388 = vpop.f32.mrf.mxu0
  %389 = vmatprep.mubr.f32.mxu0 0.0
  %390 = vmatmul.mubr.f32.gmra.mxu0 %v170
  %v391 = vpop.f32.mrf.mxu0
  %v392 = vadd.f32 0.0, %v391
  %v393 = vpop.f32.mrf.mxu0
  %394 = vmatprep.mubr.f32.mxu0 0.0
  %395 = vmatmul.mubr.f32.gmra.mxu0 %v173
  %v396 = vpop.f32.mrf.mxu0
  %v397 = vadd.f32 0.0, %v396
  %v398 = vpop.f32.mrf.mxu0
  %399 = vdwg.mxu0
  %vm400 = vcmask 523264
  %v401 = vsel %vm400, %v242, 0.0
  %v402 = vsel %vm400, %v247, 0.0
  %v403 = vadd.f32 %v401, %v402
  %v404 = vsel %vm400, %v252, 0.0
  %v405 = vadd.f32 %v403, %v404
  %v406 = vsel %vm400, %v257, 0.0
  %v407 = vadd.f32 %v405, %v406
  %v408 = vsel %vm400, %v262, 0.0
  %v409 = vadd.f32 %v407, %v408
  %v410 = vsel %vm400, %v267, 0.0
  %v411 = vadd.f32 %v409, %v410
  %v412 = vsel %vm400, %v272, 0.0
  %v413 = vadd.f32 %v411, %v412
  %v414 = vsel %vm400, %v277, 0.0
  %v415 = vadd.f32 %v413, %v414
  %v416 = vsel %vm400, %v282, 0.0
  %v417 = vadd.f32 %v415, %v416
  %v418 = vsel %vm400, %v287, 0.0
  %v419 = vadd.f32 %v417, %v418
  %v420 = vsel %vm400, %v292, 0.0
  %v421 = vadd.f32 %v419, %v420
  %v422 = vsel %vm400, %v297, 0.0
  %v423 = vadd.f32 %v421, %v422
  %v424 = vsel %vm400, %v302, 0.0
  %v425 = vadd.f32 %v423, %v424
  %v426 = vsel %vm400, %v307, 0.0
  %v427 = vadd.f32 %v425, %v426
  %v428 = vsel %vm400, %v312, 0.0
  %v429 = vadd.f32 %v427, %v428
  %v430 = vsel %vm400, %v317, 0.0
  %v431 = vadd.f32 %v429, %v430
  %v432 = vsel %vm400, %v322, 0.0
  %v433 = vadd.f32 %v431, %v432
  %v434 = vsel %vm400, %v327, 0.0
  %v435 = vadd.f32 %v433, %v434
  %v436 = vsel %vm400, %v332, 0.0
  %v437 = vadd.f32 %v435, %v436
  %v438 = vsel %vm400, %v337, 0.0
  %v439 = vadd.f32 %v437, %v438
  %v440 = vsel %vm400, %v342, 0.0
  %v441 = vadd.f32 %v439, %v440
  %v442 = vsel %vm400, %v347, 0.0
  %v443 = vadd.f32 %v441, %v442
  %v444 = vsel %vm400, %v352, 0.0
  %v445 = vadd.f32 %v443, %v444
  %v446 = vsel %vm400, %v357, 0.0
  %v447 = vadd.f32 %v445, %v446
  %v448 = vsel %vm400, %v362, 0.0
  %v449 = vadd.f32 %v447, %v448
  %v450 = vsel %vm400, %v367, 0.0
  %v451 = vadd.f32 %v449, %v450
  %v452 = vsel %vm400, %v372, 0.0
  %v453 = vadd.f32 %v451, %v452
  %v454 = vsel %vm400, %v377, 0.0
  %v455 = vadd.f32 %v453, %v454
  %v456 = vsel %vm400, %v382, 0.0
  %v457 = vadd.f32 %v455, %v456
  %v458 = vsel %vm400, %v387, 0.0
  %v459 = vadd.f32 %v457, %v458
  %v460 = vsel %vm400, %v392, 0.0
  %v461 = vadd.f32 %v459, %v460
  %v462 = vsel %vm400, %v397, 0.0
  %v463 = vadd.f32 %v461, %v462
  %v464 = vrot.slane %v463, 4
  %v465 = vadd.f32 %v463, %v464
  %v466 = vrot.slane %v465, 2
  %v467 = vadd.f32 %v465, %v466
  %v468 = vrot.slane %v467, 1
  %v469 = vadd.f32 %v467, %v468
  %v470 = vmul.f32 %v242, %v242
  %v471 = vmul.f32 %v247, %v247
  %v472 = vmul.f32 %v252, %v252
  %v473 = vmul.f32 %v257, %v257
  %v474 = vmul.f32 %v262, %v262
  %v475 = vmul.f32 %v267, %v267
  %v476 = vmul.f32 %v272, %v272
  %v477 = vmul.f32 %v277, %v277
  %v478 = vmul.f32 %v282, %v282
  %v479 = vmul.f32 %v287, %v287
  %v480 = vmul.f32 %v292, %v292
  %v481 = vmul.f32 %v297, %v297
  %v482 = vmul.f32 %v302, %v302
  %v483 = vmul.f32 %v307, %v307
  %v484 = vmul.f32 %v312, %v312
  %v485 = vmul.f32 %v317, %v317
  %v486 = vmul.f32 %v322, %v322
  %v487 = vmul.f32 %v327, %v327
  %v488 = vmul.f32 %v332, %v332
  %v489 = vmul.f32 %v337, %v337
  %v490 = vmul.f32 %v342, %v342
  %v491 = vmul.f32 %v347, %v347
  %v492 = vmul.f32 %v352, %v352
  %v493 = vmul.f32 %v357, %v357
  %v494 = vmul.f32 %v362, %v362
  %v495 = vmul.f32 %v367, %v367
  %v496 = vmul.f32 %v372, %v372
  %v497 = vmul.f32 %v377, %v377
  %v498 = vmul.f32 %v382, %v382
  %v499 = vmul.f32 %v387, %v387
  %v500 = vmul.f32 %v392, %v392
  %v501 = vmul.f32 %v397, %v397
  %v502 = vsel %vm400, %v470, 0.0
  %v503 = vsel %vm400, %v471, 0.0
  %v504 = vadd.f32 %v502, %v503
  %v505 = vsel %vm400, %v472, 0.0
  %v506 = vadd.f32 %v504, %v505
  %v507 = vsel %vm400, %v473, 0.0
  %v508 = vadd.f32 %v506, %v507
  %v509 = vsel %vm400, %v474, 0.0
  %v510 = vadd.f32 %v508, %v509
  %v511 = vsel %vm400, %v475, 0.0
  %v512 = vadd.f32 %v510, %v511
  %v513 = vsel %vm400, %v476, 0.0
  %v514 = vadd.f32 %v512, %v513
  %v515 = vsel %vm400, %v477, 0.0
  %v516 = vadd.f32 %v514, %v515
  %v517 = vsel %vm400, %v478, 0.0
  %v518 = vadd.f32 %v516, %v517
  %v519 = vsel %vm400, %v479, 0.0
  %v520 = vadd.f32 %v518, %v519
  %v521 = vsel %vm400, %v480, 0.0
  %v522 = vadd.f32 %v520, %v521
  %v523 = vsel %vm400, %v481, 0.0
  %v524 = vadd.f32 %v522, %v523
  %v525 = vsel %vm400, %v482, 0.0
  %v526 = vadd.f32 %v524, %v525
  %v527 = vsel %vm400, %v483, 0.0
  %v528 = vadd.f32 %v526, %v527
  %v529 = vsel %vm400, %v484, 0.0
  %v530 = vadd.f32 %v528, %v529
  %v531 = vsel %vm400, %v485, 0.0
  %v532 = vadd.f32 %v530, %v531
  %v533 = vsel %vm400, %v486, 0.0
  %v534 = vadd.f32 %v532, %v533
  %v535 = vsel %vm400, %v487, 0.0
  %v536 = vadd.f32 %v534, %v535
  %v537 = vsel %vm400, %v488, 0.0
  %v538 = vadd.f32 %v536, %v537
  %v539 = vsel %vm400, %v489, 0.0
  %v540 = vadd.f32 %v538, %v539
  %v541 = vsel %vm400, %v490, 0.0
  %v542 = vadd.f32 %v540, %v541
  %v543 = vsel %vm400, %v491, 0.0
  %v544 = vadd.f32 %v542, %v543
  %v545 = vsel %vm400, %v492, 0.0
  %v546 = vadd.f32 %v544, %v545
  %v547 = vsel %vm400, %v493, 0.0
  %v548 = vadd.f32 %v546, %v547
  %v549 = vsel %vm400, %v494, 0.0
  %v550 = vadd.f32 %v548, %v549
  %v551 = vsel %vm400, %v495, 0.0
  %v552 = vadd.f32 %v550, %v551
  %v553 = vsel %vm400, %v496, 0.0
  %v554 = vadd.f32 %v552, %v553
  %v555 = vsel %vm400, %v497, 0.0
  %v556 = vadd.f32 %v554, %v555
  %v557 = vsel %vm400, %v498, 0.0
  %v558 = vadd.f32 %v556, %v557
  %v559 = vsel %vm400, %v499, 0.0
  %v560 = vadd.f32 %v558, %v559
  %v561 = vsel %vm400, %v500, 0.0
  %v562 = vadd.f32 %v560, %v561
  %v563 = vsel %vm400, %v501, 0.0
  %v564 = vadd.f32 %v562, %v563
  %v565 = vrot.slane %v564, 4
  %v566 = vadd.f32 %v564, %v565
  %v567 = vrot.slane %v566, 2
  %v568 = vadd.f32 %v566, %v567
  %v569 = vrot.slane %v568, 1
  %v570 = vadd.f32 %v568, %v569
  %v571 = vmul.f32 %v469, 0.00390625
  %v572 = vmul.f32 %v570, 0.00390625
  %v573 = vmul.f32 %v571, %v571
  %v574 = vsub.f32 %v572, %v573
  %v575 = vadd.f32 %v574, 1e-05
  %v576 = vrsqrt.pop %v575
  %v577 = vmul.f32 %v76, %v576
  %v578 = vmul.f32 %v571, %v577
  %v579 = vsub.f32 %v77, %v578
  %v581 = vlaneseq
  %v582 = vshrl.u32 %v581, 7
  %v583 = vsub.s32 0, %v582
  %v584 = vrot.slane %v577, %v583
  %v586 = vmul.f32 %v242, %v584
  %v587 = vmul.f32 %v247, %v584
  %v588 = vmul.f32 %v252, %v584
  %v589 = vmul.f32 %v257, %v584
  %v590 = vmul.f32 %v262, %v584
  %v591 = vmul.f32 %v267, %v584
  %v592 = vmul.f32 %v272, %v584
  %v593 = vmul.f32 %v277, %v584
  %v594 = vmul.f32 %v282, %v584
  %v595 = vmul.f32 %v287, %v584
  %v596 = vmul.f32 %v292, %v584
  %v597 = vmul.f32 %v297, %v584
  %v598 = vmul.f32 %v302, %v584
  %v599 = vmul.f32 %v307, %v584
  %v600 = vmul.f32 %v312, %v584
  %v601 = vmul.f32 %v317, %v584
  %v602 = vmul.f32 %v322, %v584
  %v603 = vmul.f32 %v327, %v584
  %v604 = vmul.f32 %v332, %v584
  %v605 = vmul.f32 %v337, %v584
  %v606 = vmul.f32 %v342, %v584
  %v607 = vmul.f32 %v347, %v584
  %v608 = vmul.f32 %v352, %v584
  %v609 = vmul.f32 %v357, %v584
  %v610 = vmul.f32 %v362, %v584
  %v611 = vmul.f32 %v367, %v584
  %v612 = vmul.f32 %v372, %v584
  %v613 = vmul.f32 %v377, %v584
  %v614 = vmul.f32 %v382, %v584
  %v615 = vmul.f32 %v387, %v584
  %v616 = vmul.f32 %v392, %v584
  %v617 = vmul.f32 %v397, %v584
  %v619 = vlaneseq
  %v620 = vshrl.u32 %v619, 7
  %v621 = vsub.s32 0, %v620
  %v622 = vrot.slane %v579, %v621
  %v624 = vadd.f32 %v586, %v622
  %v625 = vadd.f32 %v587, %v622
  %v626 = vadd.f32 %v588, %v622
  %v627 = vadd.f32 %v589, %v622
  %v628 = vadd.f32 %v590, %v622
  %v629 = vadd.f32 %v591, %v622
  %v630 = vadd.f32 %v592, %v622
  %v631 = vadd.f32 %v593, %v622
  %v632 = vadd.f32 %v594, %v622
  %v633 = vadd.f32 %v595, %v622
  %v634 = vadd.f32 %v596, %v622
  %v635 = vadd.f32 %v597, %v622
  %v636 = vadd.f32 %v598, %v622
  %v637 = vadd.f32 %v599, %v622
  %v638 = vadd.f32 %v600, %v622
  %v639 = vadd.f32 %v601, %v622
  %v640 = vadd.f32 %v602, %v622
  %v641 = vadd.f32 %v603, %v622
  %v642 = vadd.f32 %v604, %v622
  %v643 = vadd.f32 %v605, %v622
  %v644 = vadd.f32 %v606, %v622
  %v645 = vadd.f32 %v607, %v622
  %v646 = vadd.f32 %v608, %v622
  %v647 = vadd.f32 %v609, %v622
  %v648 = vadd.f32 %v610, %v622
  %v649 = vadd.f32 %v611, %v622
  %v650 = vadd.f32 %v612, %v622
  %v651 = vadd.f32 %v613, %v622
  %v652 = vadd.f32 %v614, %v622
  %v653 = vadd.f32 %v615, %v622
  %v654 = vadd.f32 %v616, %v622
  %v655 = vadd.f32 %v617, %v622
  %v656 = vmax.f32 %v624, 0.0
  %v657 = vmax.f32 %v625, 0.0
  %v658 = vmax.f32 %v626, 0.0
  %v659 = vmax.f32 %v627, 0.0
  %v660 = vmax.f32 %v628, 0.0
  %v661 = vmax.f32 %v629, 0.0
  %v662 = vmax.f32 %v630, 0.0
  %v663 = vmax.f32 %v631, 0.0
  %v664 = vmax.f32 %v632, 0.0
  %v665 = vmax.f32 %v633, 0.0
  %v666 = vmax.f32 %v634, 0.0
  %v667 = vmax.f32 %v635, 0.0
  %v668 = vmax.f32 %v636, 0.0
  %v669 = vmax.f32 %v637, 0.0
  %v670 = vmax.f32 %v638, 0.0
  %v671 = vmax.f32 %v639, 0.0
  %v672 = vmax.f32 %v640, 0.0
  %v673 = vmax.f32 %v641, 0.0
  %v674 = vmax.f32 %v642, 0.0
  %v675 = vmax.f32 %v643, 0.0
  %v676 = vmax.f32 %v644, 0.0
  %v677 = vmax.f32 %v645, 0.0
  %v678 = vmax.f32 %v646, 0.0
  %v679 = vmax.f32 %v647, 0.0
  %v680 = vmax.f32 %v648, 0.0
  %v681 = vmax.f32 %v649, 0.0
  %v682 = vmax.f32 %v650, 0.0
  %v683 = vmax.f32 %v651, 0.0
  %v684 = vmax.f32 %v652, 0.0
  %v685 = vmax.f32 %v653, 0.0
  %v686 = vmax.f32 %v654, 0.0
  %v687 = vmax.f32 %v655, 0.0
  %v688 = vld [vmem:[%s4] sm:$0xff]
  %v689 = vld [vmem:[%s4 + $0x8] sm:$0xff]
  %v690 = vld [vmem:[%s4 + $0x10] sm:$0xff]
  %v691 = vld [vmem:[%s4 + $0x18] sm:$0xff]
  %v692 = vld [vmem:[%s4 + $0x20] sm:$0xff]
  %v693 = vld [vmem:[%s4 + $0x28] sm:$0xff]
  %v694 = vld [vmem:[%s4 + $0x30] sm:$0xff]
  %v695 = vld [vmem:[%s4 + $0x38] sm:$0xff]
  %v696 = vld [vmem:[%s5] sm:$0x1]
  %v697 = vld [vmem:[%s6] sm:$0x1]
  %v699 = vsel %vm400, %v656, 0
  %v702 = vsel %vm400, %v657, 0
  %v705 = vsel %vm400, %v658, 0
  %v708 = vsel %vm400, %v659, 0
  %v711 = vsel %vm400, %v660, 0
  %v714 = vsel %vm400, %v661, 0
  %v717 = vsel %vm400, %v662, 0
  %v720 = vsel %vm400, %v663, 0
  %v723 = vsel %vm400, %v664, 0
  %v726 = vsel %vm400, %v665, 0
  %v729 = vsel %vm400, %v666, 0
  %v732 = vsel %vm400, %v667, 0
  %v735 = vsel %vm400, %v668, 0
  %v738 = vsel %vm400, %v669, 0
  %v741 = vsel %vm400, %v670, 0
  %v744 = vsel %vm400, %v671, 0
  %v747 = vsel %vm400, %v672, 0
  %v750 = vsel %vm400, %v673, 0
  %v753 = vsel %vm400, %v674, 0
  %v756 = vsel %vm400, %v675, 0
  %v759 = vsel %vm400, %v676, 0
  %v762 = vsel %vm400, %v677, 0
  %v765 = vsel %vm400, %v678, 0
  %v768 = vsel %vm400, %v679, 0
  %v771 = vsel %vm400, %v680, 0
  %v774 = vsel %vm400, %v681, 0
  %v777 = vsel %vm400, %v682, 0
  %v780 = vsel %vm400, %v683, 0
  %v783 = vsel %vm400, %v684, 0
  %v786 = vsel %vm400, %v685, 0
  %v789 = vsel %vm400, %v686, 0
  %v792 = vsel %vm400, %v687, 0
  %794 = vmatprep.subr.mxu0 0.0
  %795 = vmatpush1.msra.mxu0 0.0
  %796 = vmatprep.subr.mxu0 0.0
  %797 = vmatpush1.msra.mxu0 0.0
  %798 = vmatprep.subr.mxu0 0.0
  %799 = vmatpush1.msra.mxu0 0.0
  %800 = vmatprep.subr.mxu0 0.0
  %801 = vmatpush1.msra.mxu0 0.0
  %802 = vmatprep.subr.mxu0 0.0
  %803 = vmatpush1.msra.mxu0 0.0
  %804 = vmatprep.subr.mxu0 0.0
  %805 = vmatpush1.msra.mxu0 0.0
  %806 = vmatprep.subr.mxu0 0.0
  %807 = vmatpush1.msra.mxu0 0.0
  %808 = vmatprep.subr.mxu0 0.0
  %809 = vmatpush1.msra.mxu0 0.0
  %810 = vmatprep.subr.mxu0 0.0
  %811 = vmatpush1.msra.mxu0 %v695
  %812 = vmatprep.subr.mxu0 0.0
  %813 = vmatpush1.msra.mxu0 %v694
  %814 = vmatprep.subr.mxu0 0.0
  %815 = vmatpush1.msra.mxu0 %v693
  %816 = vmatprep.subr.mxu0 0.0
  %817 = vmatpush1.msra.mxu0 %v692
  %818 = vmatprep.subr.mxu0 0.0
  %819 = vmatpush1.msra.mxu0 %v691
  %820 = vmatprep.subr.mxu0 0.0
  %821 = vmatpush1.msra.mxu0 %v690
  %822 = vmatprep.subr.mxu0 0.0
  %823 = vmatpush1.msra.mxu0 %v689
  %824 = vmatprep.subr.mxu0 0.0
  %825 = vmatpush1.msra.mxu0 %v688
  %826 = vmatprep.subr.mxu0 0.0
  %827 = vmatpush2.msra.mxu0 0.0
  %828 = vmatprep.subr.mxu0 0.0
  %829 = vmatpush2.msra.mxu0 0.0
  %830 = vmatprep.subr.mxu0 0.0
  %831 = vmatpush2.msra.mxu0 0.0
  %832 = vmatprep.subr.mxu0 0.0
  %833 = vmatpush2.msra.mxu0 0.0
  %834 = vmatprep.subr.mxu0 0.0
  %835 = vmatpush2.msra.mxu0 0.0
  %836 = vmatprep.subr.mxu0 0.0
  %837 = vmatpush2.msra.mxu0 0.0
  %838 = vmatprep.subr.mxu0 0.0
  %839 = vmatpush2.msra.mxu0 0.0
  %840 = vmatprep.subr.mxu0 0.0
  %841 = vmatpush2.msra.mxu0 0.0
  %842 = vmatprep.subr.mxu0 0.0
  %843 = vmatpush2.msra.mxu0 0.0
  %844 = vmatprep.subr.mxu0 0.0
  %845 = vmatpush2.msra.mxu0 0.0
  %846 = vmatprep.subr.mxu0 0.0
  %847 = vmatpush2.msra.mxu0 0.0
  %848 = vmatprep.subr.mxu0 0.0
  %849 = vmatpush2.msra.mxu0 0.0
  %850 = vmatprep.subr.mxu0 0.0
  %851 = vmatpush2.msra.mxu0 0.0
  %852 = vmatprep.subr.mxu0 0.0
  %853 = vmatpush2.msra.mxu0 0.0
  %854 = vmatprep.subr.mxu0 0.0
  %855 = vmatpush2.msra.mxu0 0.0
  %856 = vmatprep.subr.mxu0 0.0
  %857 = vmatpush2.msra.mxu0 0.0
  %858 = vmatprep.mubr.f32.mxu0 0.0
  %859 = vmatmul.mubr.f32.gmra.mxu0 %v699
  %v860 = vpop.f32.mrf.mxu0
  %v861 = vadd.f32 0.0, %v860
  %v862 = vpop.f32.mrf.mxu0
  %863 = vmatprep.mubr.f32.mxu0 0.0
  %864 = vmatmul.mubr.f32.gmra.mxu0 %v702
  %v865 = vpop.f32.mrf.mxu0
  %v866 = vadd.f32 0.0, %v865
  %v867 = vpop.f32.mrf.mxu0
  %868 = vmatprep.mubr.f32.mxu0 0.0
  %869 = vmatmul.mubr.f32.gmra.mxu0 %v705
  %v870 = vpop.f32.mrf.mxu0
  %v871 = vadd.f32 0.0, %v870
  %v872 = vpop.f32.mrf.mxu0
  %873 = vmatprep.mubr.f32.mxu0 0.0
  %874 = vmatmul.mubr.f32.gmra.mxu0 %v708
  %v875 = vpop.f32.mrf.mxu0
  %v876 = vadd.f32 0.0, %v875
  %v877 = vpop.f32.mrf.mxu0
  %878 = vmatprep.mubr.f32.mxu0 0.0
  %879 = vmatmul.mubr.f32.gmra.mxu0 %v711
  %v880 = vpop.f32.mrf.mxu0
  %v881 = vadd.f32 0.0, %v880
  %v882 = vpop.f32.mrf.mxu0
  %883 = vmatprep.mubr.f32.mxu0 0.0
  %884 = vmatmul.mubr.f32.gmra.mxu0 %v714
  %v885 = vpop.f32.mrf.mxu0
  %v886 = vadd.f32 0.0, %v885
  %v887 = vpop.f32.mrf.mxu0
  %888 = vmatprep.mubr.f32.mxu0 0.0
  %889 = vmatmul.mubr.f32.gmra.mxu0 %v717
  %v890 = vpop.f32.mrf.mxu0
  %v891 = vadd.f32 0.0, %v890
  %v892 = vpop.f32.mrf.mxu0
  %893 = vmatprep.mubr.f32.mxu0 0.0
  %894 = vmatmul.mubr.f32.gmra.mxu0 %v720
  %v895 = vpop.f32.mrf.mxu0
  %v896 = vadd.f32 0.0, %v895
  %v897 = vpop.f32.mrf.mxu0
  %898 = vmatprep.mubr.f32.mxu0 0.0
  %899 = vmatmul.mubr.f32.gmra.mxu0 %v723
  %v900 = vpop.f32.mrf.mxu0
  %v901 = vadd.f32 0.0, %v900
  %v902 = vpop.f32.mrf.mxu0
  %903 = vmatprep.mubr.f32.mxu0 0.0
  %904 = vmatmul.mubr.f32.gmra.mxu0 %v726
  %v905 = vpop.f32.mrf.mxu0
  %v906 = vadd.f32 0.0, %v905
  %v907 = vpop.f32.mrf.mxu0
  %908 = vmatprep.mubr.f32.mxu0 0.0
  %909 = vmatmul.mubr.f32.gmra.mxu0 %v729
  %v910 = vpop.f32.mrf.mxu0
  %v911 = vadd.f32 0.0, %v910
  %v912 = vpop.f32.mrf.mxu0
  %913 = vmatprep.mubr.f32.mxu0 0.0
  %914 = vmatmul.mubr.f32.gmra.mxu0 %v732
  %v915 = vpop.f32.mrf.mxu0
  %v916 = vadd.f32 0.0, %v915
  %v917 = vpop.f32.mrf.mxu0
  %918 = vmatprep.mubr.f32.mxu0 0.0
  %919 = vmatmul.mubr.f32.gmra.mxu0 %v735
  %v920 = vpop.f32.mrf.mxu0
  %v921 = vadd.f32 0.0, %v920
  %v922 = vpop.f32.mrf.mxu0
  %923 = vmatprep.mubr.f32.mxu0 0.0
  %924 = vmatmul.mubr.f32.gmra.mxu0 %v738
  %v925 = vpop.f32.mrf.mxu0
  %v926 = vadd.f32 0.0, %v925
  %v927 = vpop.f32.mrf.mxu0
  %928 = vmatprep.mubr.f32.mxu0 0.0
  %929 = vmatmul.mubr.f32.gmra.mxu0 %v741
  %v930 = vpop.f32.mrf.mxu0
  %v931 = vadd.f32 0.0, %v930
  %v932 = vpop.f32.mrf.mxu0
  %933 = vmatprep.mubr.f32.mxu0 0.0
  %934 = vmatmul.mubr.f32.gmra.mxu0 %v744
  %v935 = vpop.f32.mrf.mxu0
  %v936 = vadd.f32 0.0, %v935
  %v937 = vpop.f32.mrf.mxu0
  %938 = vmatprep.mubr.f32.mxu0 0.0
  %939 = vmatmul.mubr.f32.gmra.mxu0 %v747
  %v940 = vpop.f32.mrf.mxu0
  %v941 = vadd.f32 0.0, %v940
  %v942 = vpop.f32.mrf.mxu0
  %943 = vmatprep.mubr.f32.mxu0 0.0
  %944 = vmatmul.mubr.f32.gmra.mxu0 %v750
  %v945 = vpop.f32.mrf.mxu0
  %v946 = vadd.f32 0.0, %v945
  %v947 = vpop.f32.mrf.mxu0
  %948 = vmatprep.mubr.f32.mxu0 0.0
  %949 = vmatmul.mubr.f32.gmra.mxu0 %v753
  %v950 = vpop.f32.mrf.mxu0
  %v951 = vadd.f32 0.0, %v950
  %v952 = vpop.f32.mrf.mxu0
  %953 = vmatprep.mubr.f32.mxu0 0.0
  %954 = vmatmul.mubr.f32.gmra.mxu0 %v756
  %v955 = vpop.f32.mrf.mxu0
  %v956 = vadd.f32 0.0, %v955
  %v957 = vpop.f32.mrf.mxu0
  %958 = vmatprep.mubr.f32.mxu0 0.0
  %959 = vmatmul.mubr.f32.gmra.mxu0 %v759
  %v960 = vpop.f32.mrf.mxu0
  %v961 = vadd.f32 0.0, %v960
  %v962 = vpop.f32.mrf.mxu0
  %963 = vmatprep.mubr.f32.mxu0 0.0
  %964 = vmatmul.mubr.f32.gmra.mxu0 %v762
  %v965 = vpop.f32.mrf.mxu0
  %v966 = vadd.f32 0.0, %v965
  %v967 = vpop.f32.mrf.mxu0
  %968 = vmatprep.mubr.f32.mxu0 0.0
  %969 = vmatmul.mubr.f32.gmra.mxu0 %v765
  %v970 = vpop.f32.mrf.mxu0
  %v971 = vadd.f32 0.0, %v970
  %v972 = vpop.f32.mrf.mxu0
  %973 = vmatprep.mubr.f32.mxu0 0.0
  %974 = vmatmul.mubr.f32.gmra.mxu0 %v768
  %v975 = vpop.f32.mrf.mxu0
  %v976 = vadd.f32 0.0, %v975
  %v977 = vpop.f32.mrf.mxu0
  %978 = vmatprep.mubr.f32.mxu0 0.0
  %979 = vmatmul.mubr.f32.gmra.mxu0 %v771
  %v980 = vpop.f32.mrf.mxu0
  %v981 = vadd.f32 0.0, %v980
  %v982 = vpop.f32.mrf.mxu0
  %983 = vmatprep.mubr.f32.mxu0 0.0
  %984 = vmatmul.mubr.f32.gmra.mxu0 %v774
  %v985 = vpop.f32.mrf.mxu0
  %v986 = vadd.f32 0.0, %v985
  %v987 = vpop.f32.mrf.mxu0
  %988 = vmatprep.mubr.f32.mxu0 0.0
  %989 = vmatmul.mubr.f32.gmra.mxu0 %v777
  %v990 = vpop.f32.mrf.mxu0
  %v991 = vadd.f32 0.0, %v990
  %v992 = vpop.f32.mrf.mxu0
  %993 = vmatprep.mubr.f32.mxu0 0.0
  %994 = vmatmul.mubr.f32.gmra.mxu0 %v780
  %v995 = vpop.f32.mrf.mxu0
  %v996 = vadd.f32 0.0, %v995
  %v997 = vpop.f32.mrf.mxu0
  %998 = vmatprep.mubr.f32.mxu0 0.0
  %999 = vmatmul.mubr.f32.gmra.mxu0 %v783
  %v1000 = vpop.f32.mrf.mxu0
  %v1001 = vadd.f32 0.0, %v1000
  %v1002 = vpop.f32.mrf.mxu0
  %1003 = vmatprep.mubr.f32.mxu0 0.0
  %1004 = vmatmul.mubr.f32.gmra.mxu0 %v786
  %v1005 = vpop.f32.mrf.mxu0
  %v1006 = vadd.f32 0.0, %v1005
  %v1007 = vpop.f32.mrf.mxu0
  %1008 = vmatprep.mubr.f32.mxu0 0.0
  %1009 = vmatmul.mubr.f32.gmra.mxu0 %v789
  %v1010 = vpop.f32.mrf.mxu0
  %v1011 = vadd.f32 0.0, %v1010
  %v1012 = vpop.f32.mrf.mxu0
  %1013 = vmatprep.mubr.f32.mxu0 0.0
  %1014 = vmatmul.mubr.f32.gmra.mxu0 %v792
  %v1015 = vpop.f32.mrf.mxu0
  %v1016 = vadd.f32 0.0, %v1015
  %v1017 = vpop.f32.mrf.mxu0
  %1018 = vdwg.mxu0
  %v1019 = vadd.f32 %v861, %v866
  %v1020 = vadd.f32 %v1019, %v871
  %v1021 = vadd.f32 %v1020, %v876
  %v1022 = vadd.f32 %v1021, %v881
  %v1023 = vadd.f32 %v1022, %v886
  %v1024 = vadd.f32 %v1023, %v891
  %v1025 = vadd.f32 %v1024, %v896
  %v1026 = vadd.f32 %v1025, %v901
  %v1027 = vadd.f32 %v1026, %v906
  %v1028 = vadd.f32 %v1027, %v911
  %v1029 = vadd.f32 %v1028, %v916
  %v1030 = vadd.f32 %v1029, %v921
  %v1031 = vadd.f32 %v1030, %v926
  %v1032 = vadd.f32 %v1031, %v931
  %v1033 = vadd.f32 %v1032, %v936
  %v1034 = vadd.f32 %v1033, %v941
  %v1035 = vadd.f32 %v1034, %v946
  %v1036 = vadd.f32 %v1035, %v951
  %v1037 = vadd.f32 %v1036, %v956
  %v1038 = vadd.f32 %v1037, %v961
  %v1039 = vadd.f32 %v1038, %v966
  %v1040 = vadd.f32 %v1039, %v971
  %v1041 = vadd.f32 %v1040, %v976
  %v1042 = vadd.f32 %v1041, %v981
  %v1043 = vadd.f32 %v1042, %v986
  %v1044 = vadd.f32 %v1043, %v991
  %v1045 = vadd.f32 %v1044, %v996
  %v1046 = vadd.f32 %v1045, %v1001
  %v1047 = vadd.f32 %v1046, %v1006
  %v1048 = vadd.f32 %v1047, %v1011
  %v1049 = vadd.f32 %v1048, %v1016
  %v1050 = vrot.slane %v1049, 4
  %v1051 = vadd.f32 %v1049, %v1050
  %v1052 = vrot.slane %v1051, 2
  %v1053 = vadd.f32 %v1051, %v1052
  %v1054 = vrot.slane %v1053, 1
  %v1055 = vadd.f32 %v1053, %v1054
  %v1056 = vmul.f32 %v861, %v861
  %v1057 = vmul.f32 %v866, %v866
  %v1058 = vmul.f32 %v871, %v871
  %v1059 = vmul.f32 %v876, %v876
  %v1060 = vmul.f32 %v881, %v881
  %v1061 = vmul.f32 %v886, %v886
  %v1062 = vmul.f32 %v891, %v891
  %v1063 = vmul.f32 %v896, %v896
  %v1064 = vmul.f32 %v901, %v901
  %v1065 = vmul.f32 %v906, %v906
  %v1066 = vmul.f32 %v911, %v911
  %v1067 = vmul.f32 %v916, %v916
  %v1068 = vmul.f32 %v921, %v921
  %v1069 = vmul.f32 %v926, %v926
  %v1070 = vmul.f32 %v931, %v931
  %v1071 = vmul.f32 %v936, %v936
  %v1072 = vmul.f32 %v941, %v941
  %v1073 = vmul.f32 %v946, %v946
  %v1074 = vmul.f32 %v951, %v951
  %v1075 = vmul.f32 %v956, %v956
  %v1076 = vmul.f32 %v961, %v961
  %v1077 = vmul.f32 %v966, %v966
  %v1078 = vmul.f32 %v971, %v971
  %v1079 = vmul.f32 %v976, %v976
  %v1080 = vmul.f32 %v981, %v981
  %v1081 = vmul.f32 %v986, %v986
  %v1082 = vmul.f32 %v991, %v991
  %v1083 = vmul.f32 %v996, %v996
  %v1084 = vmul.f32 %v1001, %v1001
  %v1085 = vmul.f32 %v1006, %v1006
  %v1086 = vmul.f32 %v1011, %v1011
  %v1087 = vmul.f32 %v1016, %v1016
  %v1088 = vadd.f32 %v1056, %v1057
  %v1089 = vadd.f32 %v1088, %v1058
  %v1090 = vadd.f32 %v1089, %v1059
  %v1091 = vadd.f32 %v1090, %v1060
  %v1092 = vadd.f32 %v1091, %v1061
  %v1093 = vadd.f32 %v1092, %v1062
  %v1094 = vadd.f32 %v1093, %v1063
  %v1095 = vadd.f32 %v1094, %v1064
  %v1096 = vadd.f32 %v1095, %v1065
  %v1097 = vadd.f32 %v1096, %v1066
  %v1098 = vadd.f32 %v1097, %v1067
  %v1099 = vadd.f32 %v1098, %v1068
  %v1100 = vadd.f32 %v1099, %v1069
  %v1101 = vadd.f32 %v1100, %v1070
  %v1102 = vadd.f32 %v1101, %v1071
  %v1103 = vadd.f32 %v1102, %v1072
  %v1104 = vadd.f32 %v1103, %v1073
  %v1105 = vadd.f32 %v1104, %v1074
  %v1106 = vadd.f32 %v1105, %v1075
  %v1107 = vadd.f32 %v1106, %v1076
  %v1108 = vadd.f32 %v1107, %v1077
  %v1109 = vadd.f32 %v1108, %v1078
  %v1110 = vadd.f32 %v1109, %v1079
  %v1111 = vadd.f32 %v1110, %v1080
  %v1112 = vadd.f32 %v1111, %v1081
  %v1113 = vadd.f32 %v1112, %v1082
  %v1114 = vadd.f32 %v1113, %v1083
  %v1115 = vadd.f32 %v1114, %v1084
  %v1116 = vadd.f32 %v1115, %v1085
  %v1117 = vadd.f32 %v1116, %v1086
  %v1118 = vadd.f32 %v1117, %v1087
  %v1119 = vrot.slane %v1118, 4
  %v1120 = vadd.f32 %v1118, %v1119
  %v1121 = vrot.slane %v1120, 2
  %v1122 = vadd.f32 %v1120, %v1121
  %v1123 = vrot.slane %v1122, 1
  %v1124 = vadd.f32 %v1122, %v1123
  %v1125 = vmul.f32 %v1055, 0.00390625
  %v1126 = vmul.f32 %v1124, 0.00390625
  %v1127 = vmul.f32 %v1125, %v1125
  %v1128 = vsub.f32 %v1126, %v1127
  %v1129 = vadd.f32 %v1128, 1e-05
  %v1130 = vrsqrt.pop %v1129
  %v1131 = vmul.f32 %v696, %v1130
  %v1132 = vmul.f32 %v1125, %v1131
  %v1133 = vsub.f32 %v697, %v1132
  %v1135 = vlaneseq
  %v1136 = vshrl.u32 %v1135, 7
  %v1137 = vsub.s32 0, %v1136
  %v1138 = vrot.slane %v1131, %v1137
  %v1140 = vmul.f32 %v861, %v1138
  %v1141 = vmul.f32 %v866, %v1138
  %v1142 = vmul.f32 %v871, %v1138
  %v1143 = vmul.f32 %v876, %v1138
  %v1144 = vmul.f32 %v881, %v1138
  %v1145 = vmul.f32 %v886, %v1138
  %v1146 = vmul.f32 %v891, %v1138
  %v1147 = vmul.f32 %v896, %v1138
  %v1148 = vmul.f32 %v901, %v1138
  %v1149 = vmul.f32 %v906, %v1138
  %v1150 = vmul.f32 %v911, %v1138
  %v1151 = vmul.f32 %v916, %v1138
  %v1152 = vmul.f32 %v921, %v1138
  %v1153 = vmul.f32 %v926, %v1138
  %v1154 = vmul.f32 %v931, %v1138
  %v1155 = vmul.f32 %v936, %v1138
  %v1156 = vmul.f32 %v941, %v1138
  %v1157 = vmul.f32 %v946, %v1138
  %v1158 = vmul.f32 %v951, %v1138
  %v1159 = vmul.f32 %v956, %v1138
  %v1160 = vmul.f32 %v961, %v1138
  %v1161 = vmul.f32 %v966, %v1138
  %v1162 = vmul.f32 %v971, %v1138
  %v1163 = vmul.f32 %v976, %v1138
  %v1164 = vmul.f32 %v981, %v1138
  %v1165 = vmul.f32 %v986, %v1138
  %v1166 = vmul.f32 %v991, %v1138
  %v1167 = vmul.f32 %v996, %v1138
  %v1168 = vmul.f32 %v1001, %v1138
  %v1169 = vmul.f32 %v1006, %v1138
  %v1170 = vmul.f32 %v1011, %v1138
  %v1171 = vmul.f32 %v1016, %v1138
  %v1173 = vlaneseq
  %v1174 = vshrl.u32 %v1173, 7
  %v1175 = vsub.s32 0, %v1174
  %v1176 = vrot.slane %v1133, %v1175
  %v1178 = vadd.f32 %v1140, %v1176
  %v1179 = vadd.f32 %v1141, %v1176
  %v1180 = vadd.f32 %v1142, %v1176
  %v1181 = vadd.f32 %v1143, %v1176
  %v1182 = vadd.f32 %v1144, %v1176
  %v1183 = vadd.f32 %v1145, %v1176
  %v1184 = vadd.f32 %v1146, %v1176
  %v1185 = vadd.f32 %v1147, %v1176
  %v1186 = vadd.f32 %v1148, %v1176
  %v1187 = vadd.f32 %v1149, %v1176
  %v1188 = vadd.f32 %v1150, %v1176
  %v1189 = vadd.f32 %v1151, %v1176
  %v1190 = vadd.f32 %v1152, %v1176
  %v1191 = vadd.f32 %v1153, %v1176
  %v1192 = vadd.f32 %v1154, %v1176
  %v1193 = vadd.f32 %v1155, %v1176
  %v1194 = vadd.f32 %v1156, %v1176
  %v1195 = vadd.f32 %v1157, %v1176
  %v1196 = vadd.f32 %v1158, %v1176
  %v1197 = vadd.f32 %v1159, %v1176
  %v1198 = vadd.f32 %v1160, %v1176
  %v1199 = vadd.f32 %v1161, %v1176
  %v1200 = vadd.f32 %v1162, %v1176
  %v1201 = vadd.f32 %v1163, %v1176
  %v1202 = vadd.f32 %v1164, %v1176
  %v1203 = vadd.f32 %v1165, %v1176
  %v1204 = vadd.f32 %v1166, %v1176
  %v1205 = vadd.f32 %v1167, %v1176
  %v1206 = vadd.f32 %v1168, %v1176
  %v1207 = vadd.f32 %v1169, %v1176
  %v1208 = vadd.f32 %v1170, %v1176
  %v1209 = vadd.f32 %v1171, %v1176
  %v1210 = vmax.f32 %v1178, 0.0
  %v1211 = vmax.f32 %v1179, 0.0
  %v1212 = vmax.f32 %v1180, 0.0
  %v1213 = vmax.f32 %v1181, 0.0
  %v1214 = vmax.f32 %v1182, 0.0
  %v1215 = vmax.f32 %v1183, 0.0
  %v1216 = vmax.f32 %v1184, 0.0
  %v1217 = vmax.f32 %v1185, 0.0
  %v1218 = vmax.f32 %v1186, 0.0
  %v1219 = vmax.f32 %v1187, 0.0
  %v1220 = vmax.f32 %v1188, 0.0
  %v1221 = vmax.f32 %v1189, 0.0
  %v1222 = vmax.f32 %v1190, 0.0
  %v1223 = vmax.f32 %v1191, 0.0
  %v1224 = vmax.f32 %v1192, 0.0
  %v1225 = vmax.f32 %v1193, 0.0
  %v1226 = vmax.f32 %v1194, 0.0
  %v1227 = vmax.f32 %v1195, 0.0
  %v1228 = vmax.f32 %v1196, 0.0
  %v1229 = vmax.f32 %v1197, 0.0
  %v1230 = vmax.f32 %v1198, 0.0
  %v1231 = vmax.f32 %v1199, 0.0
  %v1232 = vmax.f32 %v1200, 0.0
  %v1233 = vmax.f32 %v1201, 0.0
  %v1234 = vmax.f32 %v1202, 0.0
  %v1235 = vmax.f32 %v1203, 0.0
  %v1236 = vmax.f32 %v1204, 0.0
  %v1237 = vmax.f32 %v1205, 0.0
  %v1238 = vmax.f32 %v1206, 0.0
  %v1239 = vmax.f32 %v1207, 0.0
  %v1240 = vmax.f32 %v1208, 0.0
  %v1241 = vmax.f32 %v1209, 0.0
  %v1242 = vld [vmem:[%s7] sm:$0xff]
  %v1243 = vld [vmem:[%s7 + $0x8] sm:$0xff]
  %v1244 = vld [vmem:[%s7 + $0x10] sm:$0xff]
  %v1245 = vld [vmem:[%s7 + $0x18] sm:$0xff]
  %v1246 = vld [vmem:[%s7 + $0x20] sm:$0xff]
  %v1247 = vld [vmem:[%s7 + $0x28] sm:$0xff]
  %v1248 = vld [vmem:[%s7 + $0x30] sm:$0xff]
  %v1249 = vld [vmem:[%s7 + $0x38] sm:$0xff]
  %v1250 = vld [vmem:[%s7 + $0x40] sm:$0xff]
  %v1251 = vld [vmem:[%s7 + $0x48] sm:$0xff]
  %v1252 = vld [vmem:[%s7 + $0x50] sm:$0xff]
  %v1253 = vld [vmem:[%s7 + $0x58] sm:$0xff]
  %v1254 = vld [vmem:[%s7 + $0x60] sm:$0xff]
  %v1255 = vld [vmem:[%s7 + $0x68] sm:$0xff]
  %v1256 = vld [vmem:[%s7 + $0x70] sm:$0xff]
  %v1257 = vld [vmem:[%s7 + $0x78] sm:$0xff]
  %v1258 = vld [vmem:[%s8] sm:$0x1]
  %v1259 = vld [vmem:[%s9] sm:$0x1]
  %1260 = vmatprep.subr.mxu0 0.0
  %1261 = vmatpush1.msra.mxu0 %v1257
  %1262 = vmatprep.subr.mxu0 0.0
  %1263 = vmatpush1.msra.mxu0 %v1256
  %1264 = vmatprep.subr.mxu0 0.0
  %1265 = vmatpush1.msra.mxu0 %v1255
  %1266 = vmatprep.subr.mxu0 0.0
  %1267 = vmatpush1.msra.mxu0 %v1254
  %1268 = vmatprep.subr.mxu0 0.0
  %1269 = vmatpush1.msra.mxu0 %v1253
  %1270 = vmatprep.subr.mxu0 0.0
  %1271 = vmatpush1.msra.mxu0 %v1252
  %1272 = vmatprep.subr.mxu0 0.0
  %1273 = vmatpush1.msra.mxu0 %v1251
  %1274 = vmatprep.subr.mxu0 0.0
  %1275 = vmatpush1.msra.mxu0 %v1250
  %1276 = vmatprep.subr.mxu0 0.0
  %1277 = vmatpush1.msra.mxu0 %v1249
  %1278 = vmatprep.subr.mxu0 0.0
  %1279 = vmatpush1.msra.mxu0 %v1248
  %1280 = vmatprep.subr.mxu0 0.0
  %1281 = vmatpush1.msra.mxu0 %v1247
  %1282 = vmatprep.subr.mxu0 0.0
  %1283 = vmatpush1.msra.mxu0 %v1246
  %1284 = vmatprep.subr.mxu0 0.0
  %1285 = vmatpush1.msra.mxu0 %v1245
  %1286 = vmatprep.subr.mxu0 0.0
  %1287 = vmatpush1.msra.mxu0 %v1244
  %1288 = vmatprep.subr.mxu0 0.0
  %1289 = vmatpush1.msra.mxu0 %v1243
  %1290 = vmatprep.subr.mxu0 0.0
  %1291 = vmatpush1.msra.mxu0 %v1242
  %1292 = vmatprep.subr.mxu0 0.0
  %1293 = vmatpush2.msra.mxu0 0.0
  %1294 = vmatprep.subr.mxu0 0.0
  %1295 = vmatpush2.msra.mxu0 0.0
  %1296 = vmatprep.subr.mxu0 0.0
  %1297 = vmatpush2.msra.mxu0 0.0
  %1298 = vmatprep.subr.mxu0 0.0
  %1299 = vmatpush2.msra.mxu0 0.0
  %1300 = vmatprep.subr.mxu0 0.0
  %1301 = vmatpush2.msra.mxu0 0.0
  %1302 = vmatprep.subr.mxu0 0.0
  %1303 = vmatpush2.msra.mxu0 0.0
  %1304 = vmatprep.subr.mxu0 0.0
  %1305 = vmatpush2.msra.mxu0 0.0
  %1306 = vmatprep.subr.mxu0 0.0
  %1307 = vmatpush2.msra.mxu0 0.0
  %1308 = vmatprep.subr.mxu0 0.0
  %1309 = vmatpush2.msra.mxu0 0.0
  %1310 = vmatprep.subr.mxu0 0.0
  %1311 = vmatpush2.msra.mxu0 0.0
  %1312 = vmatprep.subr.mxu0 0.0
  %1313 = vmatpush2.msra.mxu0 0.0
  %1314 = vmatprep.subr.mxu0 0.0
  %1315 = vmatpush2.msra.mxu0 0.0
  %1316 = vmatprep.subr.mxu0 0.0
  %1317 = vmatpush2.msra.mxu0 0.0
  %1318 = vmatprep.subr.mxu0 0.0
  %1319 = vmatpush2.msra.mxu0 0.0
  %1320 = vmatprep.subr.mxu0 0.0
  %1321 = vmatpush2.msra.mxu0 0.0
  %1322 = vmatprep.subr.mxu0 0.0
  %1323 = vmatpush2.msra.mxu0 0.0
  %1324 = vmatprep.mubr.f32.mxu0 0.0
  %1325 = vmatmul.mubr.f32.gmra.mxu0 %v1210
  %v1326 = vpop.f32.mrf.mxu0
  %v1327 = vadd.f32 0.0, %v1326
  %v1328 = vpop.f32.mrf.mxu0
  %1329 = vmatprep.mubr.f32.mxu0 0.0
  %1330 = vmatmul.mubr.f32.gmra.mxu0 %v1211
  %v1331 = vpop.f32.mrf.mxu0
  %v1332 = vadd.f32 0.0, %v1331
  %v1333 = vpop.f32.mrf.mxu0
  %1334 = vmatprep.mubr.f32.mxu0 0.0
  %1335 = vmatmul.mubr.f32.gmra.mxu0 %v1212
  %v1336 = vpop.f32.mrf.mxu0
  %v1337 = vadd.f32 0.0, %v1336
  %v1338 = vpop.f32.mrf.mxu0
  %1339 = vmatprep.mubr.f32.mxu0 0.0
  %1340 = vmatmul.mubr.f32.gmra.mxu0 %v1213
  %v1341 = vpop.f32.mrf.mxu0
  %v1342 = vadd.f32 0.0, %v1341
  %v1343 = vpop.f32.mrf.mxu0
  %1344 = vmatprep.mubr.f32.mxu0 0.0
  %1345 = vmatmul.mubr.f32.gmra.mxu0 %v1214
  %v1346 = vpop.f32.mrf.mxu0
  %v1347 = vadd.f32 0.0, %v1346
  %v1348 = vpop.f32.mrf.mxu0
  %1349 = vmatprep.mubr.f32.mxu0 0.0
  %1350 = vmatmul.mubr.f32.gmra.mxu0 %v1215
  %v1351 = vpop.f32.mrf.mxu0
  %v1352 = vadd.f32 0.0, %v1351
  %v1353 = vpop.f32.mrf.mxu0
  %1354 = vmatprep.mubr.f32.mxu0 0.0
  %1355 = vmatmul.mubr.f32.gmra.mxu0 %v1216
  %v1356 = vpop.f32.mrf.mxu0
  %v1357 = vadd.f32 0.0, %v1356
  %v1358 = vpop.f32.mrf.mxu0
  %1359 = vmatprep.mubr.f32.mxu0 0.0
  %1360 = vmatmul.mubr.f32.gmra.mxu0 %v1217
  %v1361 = vpop.f32.mrf.mxu0
  %v1362 = vadd.f32 0.0, %v1361
  %v1363 = vpop.f32.mrf.mxu0
  %1364 = vmatprep.mubr.f32.mxu0 0.0
  %1365 = vmatmul.mubr.f32.gmra.mxu0 %v1218
  %v1366 = vpop.f32.mrf.mxu0
  %v1367 = vadd.f32 0.0, %v1366
  %v1368 = vpop.f32.mrf.mxu0
  %1369 = vmatprep.mubr.f32.mxu0 0.0
  %1370 = vmatmul.mubr.f32.gmra.mxu0 %v1219
  %v1371 = vpop.f32.mrf.mxu0
  %v1372 = vadd.f32 0.0, %v1371
  %v1373 = vpop.f32.mrf.mxu0
  %1374 = vmatprep.mubr.f32.mxu0 0.0
  %1375 = vmatmul.mubr.f32.gmra.mxu0 %v1220
  %v1376 = vpop.f32.mrf.mxu0
  %v1377 = vadd.f32 0.0, %v1376
  %v1378 = vpop.f32.mrf.mxu0
  %1379 = vmatprep.mubr.f32.mxu0 0.0
  %1380 = vmatmul.mubr.f32.gmra.mxu0 %v1221
  %v1381 = vpop.f32.mrf.mxu0
  %v1382 = vadd.f32 0.0, %v1381
  %v1383 = vpop.f32.mrf.mxu0
  %1384 = vmatprep.mubr.f32.mxu0 0.0
  %1385 = vmatmul.mubr.f32.gmra.mxu0 %v1222
  %v1386 = vpop.f32.mrf.mxu0
  %v1387 = vadd.f32 0.0, %v1386
  %v1388 = vpop.f32.mrf.mxu0
  %1389 = vmatprep.mubr.f32.mxu0 0.0
  %1390 = vmatmul.mubr.f32.gmra.mxu0 %v1223
  %v1391 = vpop.f32.mrf.mxu0
  %v1392 = vadd.f32 0.0, %v1391
  %v1393 = vpop.f32.mrf.mxu0
  %1394 = vmatprep.mubr.f32.mxu0 0.0
  %1395 = vmatmul.mubr.f32.gmra.mxu0 %v1224
  %v1396 = vpop.f32.mrf.mxu0
  %v1397 = vadd.f32 0.0, %v1396
  %v1398 = vpop.f32.mrf.mxu0
  %1399 = vmatprep.mubr.f32.mxu0 0.0
  %1400 = vmatmul.mubr.f32.gmra.mxu0 %v1225
  %v1401 = vpop.f32.mrf.mxu0
  %v1402 = vadd.f32 0.0, %v1401
  %v1403 = vpop.f32.mrf.mxu0
  %1404 = vmatprep.mubr.f32.mxu0 0.0
  %1405 = vmatmul.mubr.f32.gmra.mxu0 %v1226
  %v1406 = vpop.f32.mrf.mxu0
  %v1407 = vadd.f32 0.0, %v1406
  %v1408 = vpop.f32.mrf.mxu0
  %1409 = vmatprep.mubr.f32.mxu0 0.0
  %1410 = vmatmul.mubr.f32.gmra.mxu0 %v1227
  %v1411 = vpop.f32.mrf.mxu0
  %v1412 = vadd.f32 0.0, %v1411
  %v1413 = vpop.f32.mrf.mxu0
  %1414 = vmatprep.mubr.f32.mxu0 0.0
  %1415 = vmatmul.mubr.f32.gmra.mxu0 %v1228
  %v1416 = vpop.f32.mrf.mxu0
  %v1417 = vadd.f32 0.0, %v1416
  %v1418 = vpop.f32.mrf.mxu0
  %1419 = vmatprep.mubr.f32.mxu0 0.0
  %1420 = vmatmul.mubr.f32.gmra.mxu0 %v1229
  %v1421 = vpop.f32.mrf.mxu0
  %v1422 = vadd.f32 0.0, %v1421
  %v1423 = vpop.f32.mrf.mxu0
  %1424 = vmatprep.mubr.f32.mxu0 0.0
  %1425 = vmatmul.mubr.f32.gmra.mxu0 %v1230
  %v1426 = vpop.f32.mrf.mxu0
  %v1427 = vadd.f32 0.0, %v1426
  %v1428 = vpop.f32.mrf.mxu0
  %1429 = vmatprep.mubr.f32.mxu0 0.0
  %1430 = vmatmul.mubr.f32.gmra.mxu0 %v1231
  %v1431 = vpop.f32.mrf.mxu0
  %v1432 = vadd.f32 0.0, %v1431
  %v1433 = vpop.f32.mrf.mxu0
  %1434 = vmatprep.mubr.f32.mxu0 0.0
  %1435 = vmatmul.mubr.f32.gmra.mxu0 %v1232
  %v1436 = vpop.f32.mrf.mxu0
  %v1437 = vadd.f32 0.0, %v1436
  %v1438 = vpop.f32.mrf.mxu0
  %1439 = vmatprep.mubr.f32.mxu0 0.0
  %1440 = vmatmul.mubr.f32.gmra.mxu0 %v1233
  %v1441 = vpop.f32.mrf.mxu0
  %v1442 = vadd.f32 0.0, %v1441
  %v1443 = vpop.f32.mrf.mxu0
  %1444 = vmatprep.mubr.f32.mxu0 0.0
  %1445 = vmatmul.mubr.f32.gmra.mxu0 %v1234
  %v1446 = vpop.f32.mrf.mxu0
  %v1447 = vadd.f32 0.0, %v1446
  %v1448 = vpop.f32.mrf.mxu0
  %1449 = vmatprep.mubr.f32.mxu0 0.0
  %1450 = vmatmul.mubr.f32.gmra.mxu0 %v1235
  %v1451 = vpop.f32.mrf.mxu0
  %v1452 = vadd.f32 0.0, %v1451
  %v1453 = vpop.f32.mrf.mxu0
  %1454 = vmatprep.mubr.f32.mxu0 0.0
  %1455 = vmatmul.mubr.f32.gmra.mxu0 %v1236
  %v1456 = vpop.f32.mrf.mxu0
  %v1457 = vadd.f32 0.0, %v1456
  %v1458 = vpop.f32.mrf.mxu0
  %1459 = vmatprep.mubr.f32.mxu0 0.0
  %1460 = vmatmul.mubr.f32.gmra.mxu0 %v1237
  %v1461 = vpop.f32.mrf.mxu0
  %v1462 = vadd.f32 0.0, %v1461
  %v1463 = vpop.f32.mrf.mxu0
  %1464 = vmatprep.mubr.f32.mxu0 0.0
  %1465 = vmatmul.mubr.f32.gmra.mxu0 %v1238
  %v1466 = vpop.f32.mrf.mxu0
  %v1467 = vadd.f32 0.0, %v1466
  %v1468 = vpop.f32.mrf.mxu0
  %1469 = vmatprep.mubr.f32.mxu0 0.0
  %1470 = vmatmul.mubr.f32.gmra.mxu0 %v1239
  %v1471 = vpop.f32.mrf.mxu0
  %v1472 = vadd.f32 0.0, %v1471
  %v1473 = vpop.f32.mrf.mxu0
  %1474 = vmatprep.mubr.f32.mxu0 0.0
  %1475 = vmatmul.mubr.f32.gmra.mxu0 %v1240
  %v1476 = vpop.f32.mrf.mxu0
  %v1477 = vadd.f32 0.0, %v1476
  %v1478 = vpop.f32.mrf.mxu0
  %1479 = vmatprep.mubr.f32.mxu0 0.0
  %1480 = vmatmul.mubr.f32.gmra.mxu0 %v1241
  %v1481 = vpop.f32.mrf.mxu0
  %v1482 = vadd.f32 0.0, %v1481
  %v1483 = vpop.f32.mrf.mxu0
  %1484 = vdwg.mxu0
  %v1485 = vadd.f32 %v1327, %v1332
  %v1486 = vadd.f32 %v1485, %v1337
  %v1487 = vadd.f32 %v1486, %v1342
  %v1488 = vadd.f32 %v1487, %v1347
  %v1489 = vadd.f32 %v1488, %v1352
  %v1490 = vadd.f32 %v1489, %v1357
  %v1491 = vadd.f32 %v1490, %v1362
  %v1492 = vadd.f32 %v1491, %v1367
  %v1493 = vadd.f32 %v1492, %v1372
  %v1494 = vadd.f32 %v1493, %v1377
  %v1495 = vadd.f32 %v1494, %v1382
  %v1496 = vadd.f32 %v1495, %v1387
  %v1497 = vadd.f32 %v1496, %v1392
  %v1498 = vadd.f32 %v1497, %v1397
  %v1499 = vadd.f32 %v1498, %v1402
  %v1500 = vadd.f32 %v1499, %v1407
  %v1501 = vadd.f32 %v1500, %v1412
  %v1502 = vadd.f32 %v1501, %v1417
  %v1503 = vadd.f32 %v1502, %v1422
  %v1504 = vadd.f32 %v1503, %v1427
  %v1505 = vadd.f32 %v1504, %v1432
  %v1506 = vadd.f32 %v1505, %v1437
  %v1507 = vadd.f32 %v1506, %v1442
  %v1508 = vadd.f32 %v1507, %v1447
  %v1509 = vadd.f32 %v1508, %v1452
  %v1510 = vadd.f32 %v1509, %v1457
  %v1511 = vadd.f32 %v1510, %v1462
  %v1512 = vadd.f32 %v1511, %v1467
  %v1513 = vadd.f32 %v1512, %v1472
  %v1514 = vadd.f32 %v1513, %v1477
  %v1515 = vadd.f32 %v1514, %v1482
  %v1516 = vrot.slane %v1515, 4
  %v1517 = vadd.f32 %v1515, %v1516
  %v1518 = vrot.slane %v1517, 2
  %v1519 = vadd.f32 %v1517, %v1518
  %v1520 = vrot.slane %v1519, 1
  %v1521 = vadd.f32 %v1519, %v1520
  %v1522 = vmul.f32 %v1327, %v1327
  %v1523 = vmul.f32 %v1332, %v1332
  %v1524 = vmul.f32 %v1337, %v1337
  %v1525 = vmul.f32 %v1342, %v1342
  %v1526 = vmul.f32 %v1347, %v1347
  %v1527 = vmul.f32 %v1352, %v1352
  %v1528 = vmul.f32 %v1357, %v1357
  %v1529 = vmul.f32 %v1362, %v1362
  %v1530 = vmul.f32 %v1367, %v1367
  %v1531 = vmul.f32 %v1372, %v1372
  %v1532 = vmul.f32 %v1377, %v1377
  %v1533 = vmul.f32 %v1382, %v1382
  %v1534 = vmul.f32 %v1387, %v1387
  %v1535 = vmul.f32 %v1392, %v1392
  %v1536 = vmul.f32 %v1397, %v1397
  %v1537 = vmul.f32 %v1402, %v1402
  %v1538 = vmul.f32 %v1407, %v1407
  %v1539 = vmul.f32 %v1412, %v1412
  %v1540 = vmul.f32 %v1417, %v1417
  %v1541 = vmul.f32 %v1422, %v1422
  %v1542 = vmul.f32 %v1427, %v1427
  %v1543 = vmul.f32 %v1432, %v1432
  %v1544 = vmul.f32 %v1437, %v1437
  %v1545 = vmul.f32 %v1442, %v1442
  %v1546 = vmul.f32 %v1447, %v1447
  %v1547 = vmul.f32 %v1452, %v1452
  %v1548 = vmul.f32 %v1457, %v1457
  %v1549 = vmul.f32 %v1462, %v1462
  %v1550 = vmul.f32 %v1467, %v1467
  %v1551 = vmul.f32 %v1472, %v1472
  %v1552 = vmul.f32 %v1477, %v1477
  %v1553 = vmul.f32 %v1482, %v1482
  %v1554 = vadd.f32 %v1522, %v1523
  %v1555 = vadd.f32 %v1554, %v1524
  %v1556 = vadd.f32 %v1555, %v1525
  %v1557 = vadd.f32 %v1556, %v1526
  %v1558 = vadd.f32 %v1557, %v1527
  %v1559 = vadd.f32 %v1558, %v1528
  %v1560 = vadd.f32 %v1559, %v1529
  %v1561 = vadd.f32 %v1560, %v1530
  %v1562 = vadd.f32 %v1561, %v1531
  %v1563 = vadd.f32 %v1562, %v1532
  %v1564 = vadd.f32 %v1563, %v1533
  %v1565 = vadd.f32 %v1564, %v1534
  %v1566 = vadd.f32 %v1565, %v1535
  %v1567 = vadd.f32 %v1566, %v1536
  %v1568 = vadd.f32 %v1567, %v1537
  %v1569 = vadd.f32 %v1568, %v1538
  %v1570 = vadd.f32 %v1569, %v1539
  %v1571 = vadd.f32 %v1570, %v1540
  %v1572 = vadd.f32 %v1571, %v1541
  %v1573 = vadd.f32 %v1572, %v1542
  %v1574 = vadd.f32 %v1573, %v1543
  %v1575 = vadd.f32 %v1574, %v1544
  %v1576 = vadd.f32 %v1575, %v1545
  %v1577 = vadd.f32 %v1576, %v1546
  %v1578 = vadd.f32 %v1577, %v1547
  %v1579 = vadd.f32 %v1578, %v1548
  %v1580 = vadd.f32 %v1579, %v1549
  %v1581 = vadd.f32 %v1580, %v1550
  %v1582 = vadd.f32 %v1581, %v1551
  %v1583 = vadd.f32 %v1582, %v1552
  %v1584 = vadd.f32 %v1583, %v1553
  %v1585 = vrot.slane %v1584, 4
  %v1586 = vadd.f32 %v1584, %v1585
  %v1587 = vrot.slane %v1586, 2
  %v1588 = vadd.f32 %v1586, %v1587
  %v1589 = vrot.slane %v1588, 1
  %v1590 = vadd.f32 %v1588, %v1589
  %v1591 = vmul.f32 %v1521, 0.00390625
  %v1592 = vmul.f32 %v1590, 0.00390625
  %v1593 = vmul.f32 %v1591, %v1591
  %v1594 = vsub.f32 %v1592, %v1593
  %v1595 = vadd.f32 %v1594, 1e-05
  %v1596 = vrsqrt.pop %v1595
  %v1597 = vmul.f32 %v1258, %v1596
  %v1598 = vmul.f32 %v1591, %v1597
  %v1599 = vsub.f32 %v1259, %v1598
  %v1600 = vmax.f32 %v1327, %v1337
  %v1601 = vmax.f32 %v1332, %v1342
  %v1602 = vmax.f32 %v1600, %v1347
  %v1603 = vmax.f32 %v1601, %v1352
  %v1604 = vmax.f32 %v1602, %v1357
  %v1605 = vmax.f32 %v1603, %v1362
  %v1606 = vmax.f32 %v1604, %v1367
  %v1607 = vmax.f32 %v1605, %v1372
  %v1608 = vmax.f32 %v1606, %v1377
  %v1609 = vmax.f32 %v1607, %v1382
  %v1610 = vmax.f32 %v1608, %v1387
  %v1611 = vmax.f32 %v1609, %v1392
  %v1612 = vmax.f32 %v1610, %v1397
  %v1613 = vmax.f32 %v1611, %v1402
  %v1614 = vmax.f32 %v1612, %v1613
  %v1615 = vrot.slane %v1614, 4
  %v1616 = vmax.f32 %v1614, %v1615
  %v1617 = vrot.slane %v1616, 2
  %v1618 = vmax.f32 %v1616, %v1617
  %v1619 = vrot.slane %v1618, 1
  %v1620 = vmax.f32 %v1618, %v1619
  %v1621 = vmax.f32 %v1407, %v1417
  %v1622 = vmax.f32 %v1412, %v1422
  %v1623 = vmax.f32 %v1621, %v1427
  %v1624 = vmax.f32 %v1622, %v1432
  %v1625 = vmax.f32 %v1623, %v1437
  %v1626 = vmax.f32 %v1624, %v1442
  %v1627 = vmax.f32 %v1625, %v1447
  %v1628 = vmax.f32 %v1626, %v1452
  %v1629 = vmax.f32 %v1627, %v1457
  %v1630 = vmax.f32 %v1628, %v1462
  %v1631 = vmax.f32 %v1629, %v1467
  %v1632 = vmax.f32 %v1630, %v1472
  %v1633 = vmax.f32 %v1631, %v1477
  %v1634 = vmax.f32 %v1632, %v1482
  %v1635 = vmax.f32 %v1633, %v1634
  %v1636 = vrot.slane %v1635, 4
  %v1637 = vmax.f32 %v1635, %v1636
  %v1638 = vrot.slane %v1637, 2
  %v1639 = vmax.f32 %v1637, %v1638
  %v1640 = vrot.slane %v1639, 1
  %v1641 = vmax.f32 %v1639, %v1640
  %v1642 = vmin.f32 %v1327, %v1337
  %v1643 = vmin.f32 %v1332, %v1342
  %v1644 = vmin.f32 %v1642, %v1347
  %v1645 = vmin.f32 %v1643, %v1352
  %v1646 = vmin.f32 %v1644, %v1357
  %v1647 = vmin.f32 %v1645, %v1362
  %v1648 = vmin.f32 %v1646, %v1367
  %v1649 = vmin.f32 %v1647, %v1372
  %v1650 = vmin.f32 %v1648, %v1377
  %v1651 = vmin.f32 %v1649, %v1382
  %v1652 = vmin.f32 %v1650, %v1387
  %v1653 = vmin.f32 %v1651, %v1392
  %v1654 = vmin.f32 %v1652, %v1397
  %v1655 = vmin.f32 %v1653, %v1402
  %v1656 = vmin.f32 %v1654, %v1655
  %v1657 = vrot.slane %v1656, 4
  %v1658 = vmin.f32 %v1656, %v1657
  %v1659 = vrot.slane %v1658, 2
  %v1660 = vmin.f32 %v1658, %v1659
  %v1661 = vrot.slane %v1660, 1
  %v1662 = vmin.f32 %v1660, %v1661
  %v1663 = vmin.f32 %v1407, %v1417
  %v1664 = vmin.f32 %v1412, %v1422
  %v1665 = vmin.f32 %v1663, %v1427
  %v1666 = vmin.f32 %v1664, %v1432
  %v1667 = vmin.f32 %v1665, %v1437
  %v1668 = vmin.f32 %v1666, %v1442
  %v1669 = vmin.f32 %v1667, %v1447
  %v1670 = vmin.f32 %v1668, %v1452
  %v1671 = vmin.f32 %v1669, %v1457
  %v1672 = vmin.f32 %v1670, %v1462
  %v1673 = vmin.f32 %v1671, %v1467
  %v1674 = vmin.f32 %v1672, %v1472
  %v1675 = vmin.f32 %v1673, %v1477
  %v1676 = vmin.f32 %v1674, %v1482
  %v1677 = vmin.f32 %v1675, %v1676
  %v1678 = vrot.slane %v1677, 4
  %v1679 = vmin.f32 %v1677, %v1678
  %v1680 = vrot.slane %v1679, 2
  %v1681 = vmin.f32 %v1679, %v1680
  %v1682 = vrot.slane %v1681, 1
  %v1683 = vmin.f32 %v1681, %v1682
  %vm1684 = vcmp.ge.f32.partialorder %v1597, 0.0
  %v1686 = vlaneseq
  %v1687 = vshrl.u32 %v1686, 7
  %v1688 = vsub.s32 0, %v1687
  %v1689 = vrot.slane %v1597, %v1688
  %v1691 = vmul.f32 %v1620, %v1689
  %v1692 = vmul.f32 %v1641, %v1689
  %v1694 = vlaneseq
  %v1695 = vshrl.u32 %v1694, 7
  %v1696 = vsub.s32 0, %v1695
  %v1697 = vrot.slane %v1599, %v1696
  %v1699 = vadd.f32 %v1691, %v1697
  %v1700 = vadd.f32 %v1692, %v1697
  %v1701 = vmul.f32 %v1662, %v1689
  %v1702 = vmul.f32 %v1683, %v1689
  %v1703 = vadd.f32 %v1701, %v1697
  %v1704 = vadd.f32 %v1702, %v1697
  %v1705 = vsel %vm1684, 1, 0
  %v1706 = vlaneseq
  %v1707 = vshrl.u32 %v1706, 7
  %v1708 = vsub.s32 0, %v1707
  %v1709 = vrot.slane %v1705, %v1708
  %vm1710 = vcmp.eq.s32.totalorder %v1709, 1
  %v1713 = vrot.slane %v1700, 7
  %vm1714 = vcmask 1041409
  %v1715 = vsel %vm1714, %v1713, %v1699
  %v1719 = vrot.slane %v1704, 7
  %v1720 = vsel %vm1714, %v1719, %v1703
  %v1722 = vsel %vm1710, %v1715, %v1720
  %v1723 = vld [vmem:[%s10] sm:$0x1]
  %v1725 = vlaneseq
  %v1726 = vshrl.u32 %v1725, 7
  %v1727 = vsub.s32 0, %v1726
  %v1728 = vrot.slane %v1723, %v1727
  %v1730 = vmul.f32 %v1722, %v1728
  %vm1731 = vcmask 1041408
  %v1732 = vsel %vm1731, %v1730, 0.0
  %1733 = vadd.xlane.f32.xlu0 %v1732
  %v1734 = vpop.xlane.xlu0 %1733
  %v1735 = vld [vmem:[#allocation2] sm:$0x1]
  %v1737 = vlaneseq
  %v1738 = vshrl.u32 %v1737, 7
  %v1739 = vsub.s32 0, %v1738
  %v1740 = vrot.slane %v1735, %v1739
  %v1742 = vadd.f32 %v1734, %v1740
  %vm1743 = vcmask 1024
  %1744 = vst.msk [vmem:[%s12] sm:$0x3] %vm1743, %v1742
  // Predicated region
  $region50: #{tpu_custom_call.1} parent=0 // pred_check
    _
  $region51: #{tpu_custom_call.1} parent=0 // pred_check_branch
    %1746 = sbr.rel (0) target = $region53
  $region52: #{tpu_custom_call.1} parent=0 // pred_region
    _
  $region53: #{tpu_custom_call.1} parent=0 // pred_fallthru
    _
  // Predicated region
  $region54: #{tpu_custom_call.1} parent=0 // pred_check
    _
  $region55: #{tpu_custom_call.1} parent=0 // pred_check_branch
    %1748 = sbr.rel (0) target = $region57
  $region56: #{tpu_custom_call.1} parent=0 // pred_region
    _
  $region57: #{tpu_custom_call.1} parent=0 // pred_fallthru
    _

</llo_original>
